<compile_context>
chip_gen: v5e
topology: v5e:2x2
jax: 0.10.0
libtpu: 0.0.40
codegen_flags: <defaults>
</compile_context>

<pallas_src>
import jax
import jax.numpy as jnp
from jax import lax
from jax.experimental import pallas as pl
from jax.experimental.pallas import tpu as pltpu

HALO = 2  # vertical halo rows fetched above/below each row tile


def _conv3x3_from_window(src_ref, n_out, W, C, w_ref, b_ref, grouped):
    """3x3 'same' conv over n_out output rows via accumulated partial matmuls.

    src_ref: (n_out + 2, W, C) bf16 VMEM scratch: one halo row above/below,
             already zeroed where it falls outside the image.
    w_ref:   (3, 3*C, C) bf16 ref; rows of each ky-slab ordered (kx, cin).
    b_ref:   (1, C) f32 ref.
    returns  (n_out, W, C) f32 = conv + bias.
    """
    n_rows = n_out + 2
    src = src_ref[...]                                       # (n_rows, W, C) bf16
    zcol = jnp.zeros((n_rows, 1, C), src.dtype)
    # kx = 0 tap: output col j sees input col j-1 (zero at j == 0)
    sh_r = jnp.concatenate([zcol, src[:, :W - 1, :]], axis=1)
    # kx = 2 tap: output col j sees input col j+1 (zero at j == W-1)
    sh_l = jnp.concatenate([src[:, 1:, :], zcol], axis=1)

    acc = jnp.zeros((n_out * W, C), jnp.float32)
    if grouped:
        # K = 3C matmul per ky: wide MXU contraction, only a 3x channel concat.
        taps = jnp.concatenate([sh_r, src, sh_l], axis=-1)   # (n_rows, W, 3C)
        for ky in range(3):
            tap = taps[ky:ky + n_out].reshape(n_out * W, 3 * C)
            acc = acc + jnp.dot(tap, w_ref[ky],
                                preferred_element_type=jnp.float32)
    else:
        # C >= 256: nine accumulated K = C matmuls, no concat beyond the two
        # shifted windows.
        shifted = (sh_r, src, sh_l)
        for ky in range(3):
            wk = w_ref[ky]                                    # (3C, C) bf16
            for kx in range(3):
                tap = shifted[kx][ky:ky + n_out].reshape(n_out * W, C)
                acc = acc + jnp.dot(tap, wk[kx * C:(kx + 1) * C],
                                    preferred_element_type=jnp.float32)
    return (acc + b_ref[...]).reshape(n_out, W, C)            # f32 bias add


def make_resblock_kernel(W, C, TH, res_scale, grouped):
    def kernel(x_ref, xup_ref, xdn_ref, w1_ref, b1_ref, w2_ref, b2_ref, o_ref,
               xwin_ref, h_ref):
        r = pl.program_id(1)
        last_r = pl.num_programs(1) - 1

        # ---- bf16 input window: 2-row halo above + tile + 2-row halo below,
        # assembled directly into VMEM scratch (no full-window concat value).
        xwin_ref[HALO:HALO + TH] = x_ref[0].astype(jnp.bfloat16)
        xwin_ref[0:HALO] = xup_ref[0].astype(jnp.bfloat16)
        xwin_ref[HALO + TH:HALO + TH + HALO] = xdn_ref[0].astype(jnp.bfloat16)

        # 'same' zero padding: halo rows outside the image (their BlockSpec
        # index was clamped at the edge) are zeroed.  Only edge tiles pay this.
        @pl.when(r == 0)
        def _():
            xwin_ref[0:HALO] = jnp.zeros((HALO, W, C), jnp.bfloat16)

        @pl.when(r == last_r)
        def _():
            xwin_ref[HALO + TH:HALO + TH + HALO] = jnp.zeros(
                (HALO, W, C), jnp.bfloat16)

        # ---- conv1 + bias + ReLU on TH+2 intermediate rows (1-row halo for conv2)
        h = _conv3x3_from_window(xwin_ref, TH + 2, W, C, w1_ref, b1_ref, grouped)
        h_ref[...] = jnp.maximum(h, 0.0).astype(jnp.bfloat16)

        # Intermediate rows outside the image are conv2's zero padding
        # (NOT relu(bias)); 1-row gated stores, edge tiles only.
        @pl.when(r == 0)
        def _():
            h_ref[0:1] = jnp.zeros((1, W, C), jnp.bfloat16)

        @pl.when(r == last_r)
        def _():
            h_ref[TH + 1:TH + 2] = jnp.zeros((1, W, C), jnp.bfloat16)

        # ---- conv2 + bias on the TH output rows, residual add in f32
        y = _conv3x3_from_window(h_ref, TH, W, C, w2_ref, b2_ref, grouped)
        o_ref[0] = (y * res_scale + x_ref[0]).astype(o_ref.dtype)

    return kernel


def _step_vmem_bytes(TH, W, C):
    """Rough per-grid-step VMEM footprint (double-buffered I/O tiles, bf16
    window scratches, conv value temporaries, weights)."""
    f32, bf16 = 4, 2
    tile = TH * W * C * f32
    halo = HALO * W * C * f32
    io = 2 * tile * 2 + 2 * halo * 2                  # in + out, 2 halos, double-buffered
    wts = 2 * (2 * (9 * C * C * bf16) + 2 * C * f32)  # weights + biases, double-buffered
    scratch = (TH + 2 * HALO) * W * C * bf16 + (TH + 2) * W * C * bf16
    live = 18 * (TH + 2 * HALO) * W * C               # shifted windows / taps / f32 acc (est.)
    return io + wts + scratch + live


def _pick_row_tile(H, W, C, budget_bytes=24 * 1024 * 1024):
    """Largest even divisor of H whose per-step footprint fits the VMEM budget,
    preferring >= 2 row tiles so the grid can pipeline / split across cores."""
    cands = [th for th in range(2, H + 1, 2) if H % th == 0]
    assert cands, "H must be even"
    fitting = [th for th in cands if _step_vmem_bytes(th, W, C) <= budget_bytes]
    if not fitting:
        return min(cands)
    best = max(fitting)
    multi = [th for th in fitting if H // th >= 2]
    if multi and 2 * max(multi) >= best:
        return max(multi)
    return best


def resblock_forward(x_nchw, w1, b1, w2, b2, res_scale=1.0):
    """x_nchw: (N, C, H, W) f32; w*: (Cout, Cin, 3, 3) PyTorch OIHW; b*: (Cout,)."""
    N, C, H, W = x_nchw.shape
    assert H % 2 == 0, "2-row halo blocks assume even H"
    x = jnp.transpose(x_nchw, (0, 2, 3, 1)).astype(jnp.float32)   # NHWC, f32 residual path

    TH = _pick_row_tile(H, W, C)
    assert H % TH == 0 and TH % 2 == 0
    R = H // TH
    HB = TH // HALO               # row-tile stride measured in halo blocks

    grouped = C < 256             # K=3C ky-grouped matmuls below 256 channels, K=C above

    # (Cout, Cin, kh, kw) -> (kh, kw, Cin, Cout) -> (3, 3*Cin, Cout), bf16 for MXU.
    w1k = jnp.transpose(w1, (2, 3, 1, 0)).reshape(3, 3 * C, C).astype(jnp.bfloat16)
    w2k = jnp.transpose(w2, (2, 3, 1, 0)).reshape(3, 3 * C, C).astype(jnp.bfloat16)
    b1k = b1.reshape(1, C).astype(jnp.float32)
    b2k = b2.reshape(1, C).astype(jnp.float32)

    kernel = make_resblock_kernel(W, C, TH, float(res_scale), grouped)

    flops = 2 * 2 * 9 * N * H * W * C * C                    # two 3x3 convs
    bytes_accessed = (2 * N * H * W * C * 4                  # x in + out
                      + N * R * 2 * HALO * W * C * 4         # halo re-reads
                      + 2 * 9 * C * C * 2 + 2 * C * 4)       # weights + biases
    cost = pl.CostEstimate(flops=flops, transcendentals=0,
                           bytes_accessed=bytes_accessed)

    vmem_limit = int(min(48 * 1024 * 1024,
                         max(16 * 1024 * 1024, 2 * _step_vmem_bytes(TH, W, C))))

    out_nhwc = pl.pallas_call(
        kernel,
        out_shape=jax.ShapeDtypeStruct((N, H, W, C), jnp.float32),
        grid_spec=pltpu.PrefetchScalarGridSpec(
            num_scalar_prefetch=0,
            grid=(N, R),
            in_specs=[
                # main row tile
                pl.BlockSpec((1, TH, W, C), lambda n, r: (n, r, 0, 0)),
                # 2-row halo above (clamped at the top edge; zeroed in-kernel at r==0)
                pl.BlockSpec((1, HALO, W, C),
                             lambda n, r: (n, jnp.maximum(r * HB - 1, 0), 0, 0)),
                # 2-row halo below (clamped at the bottom edge; zeroed at r==R-1)
                pl.BlockSpec((1, HALO, W, C),
                             lambda n, r: (n, jnp.minimum((r + 1) * HB, H // HALO - 1), 0, 0)),
                # weights / biases: constant block index -> DMA'd only once
                pl.BlockSpec((3, 3 * C, C), lambda n, r: (0, 0, 0)),
                pl.BlockSpec((1, C), lambda n, r: (0, 0)),
                pl.BlockSpec((3, 3 * C, C), lambda n, r: (0, 0, 0)),
                pl.BlockSpec((1, C), lambda n, r: (0, 0)),
            ],
            out_specs=pl.BlockSpec((1, TH, W, C), lambda n, r: (n, r, 0, 0)),
            scratch_shapes=[pltpu.VMEM((TH + 2 * HALO, W, C), jnp.bfloat16),
                            pltpu.VMEM((TH + 2, W, C), jnp.bfloat16)],
        ),
        compiler_params=pltpu.CompilerParams(
            dimension_semantics=("parallel", "parallel"),
            vmem_limit_bytes=vmem_limit),
        cost_estimate=cost,
    )(x, x, x, w1k, b1k, w2k, b2k)

    return jnp.transpose(out_nhwc, (0, 3, 1, 2))              # back to NCHW


def resblock_ref(x, w1, b1, w2, b2, res_scale=1.0):
    """Pure-JAX f32 reference (NCHW / OIHW), mirroring the PyTorch forward."""
    def conv(x, w, b):
        y = lax.conv_general_dilated(
            x, w, window_strides=(1, 1), padding=((1, 1), (1, 1)),
            dimension_numbers=("NCHW", "OIHW", "NCHW"))
        return y + b[None, :, None, None]

    h = jax.nn.relu(conv(x, w1, b1))
    out = conv(h, w2, b2)
    return out * res_scale + x


if __name__ == "__main__":
    N, C, H, W = 2, 4, 16, 16
    res_scale = 1.0

    key = jax.random.PRNGKey(0)
    kx_, k1, k2, kb1, kb2 = jax.random.split(key, 5)

    x = jax.random.normal(kx_, (N, C, H, W), jnp.float32)
    fan_in = C * 3 * 3
    w1 = jax.random.normal(k1, (C, C, 3, 3), jnp.float32) / jnp.sqrt(fan_in)
    w2 = jax.random.normal(k2, (C, C, 3, 3), jnp.float32) / jnp.sqrt(fan_in)
    b1 = jax.random.normal(kb1, (C,), jnp.float32) * 0.1
    b2 = jax.random.normal(kb2, (C,), jnp.float32) * 0.1

    out = resblock_forward(x, w1, b1, w2, b2, res_scale)
    out = jax.block_until_ready(out)

    ref = resblock_ref(x, w1, b1, w2, b2, res_scale)
    assert out.shape == (N, C, H, W)
    # bf16 matmul operands (f32 accumulation) -> looser tolerance than pure f32.
    assert jnp.allclose(out, ref, atol=3e-2, rtol=3e-2), "mismatch vs JAX reference"

    print("KERNEL_OK")
</pallas_src>

<mosaic_0001>
module attributes {stable_mosaic.version = 11 : i64} {
  func.func @kernel(%arg0: i32, %arg1: i32, %arg2: memref<1x8x16x4xf32, #tpu.memory_space<vmem>>, %arg3: memref<1x2x16x4xf32, #tpu.memory_space<vmem>>, %arg4: memref<1x2x16x4xf32, #tpu.memory_space<vmem>>, %arg5: memref<3x12x4xbf16, #tpu.memory_space<vmem>>, %arg6: memref<1x4xf32, #tpu.memory_space<vmem>>, %arg7: memref<3x12x4xbf16, #tpu.memory_space<vmem>>, %arg8: memref<1x4xf32, #tpu.memory_space<vmem>>, %arg9: memref<1x8x16x4xf32, #tpu.memory_space<vmem>>, %arg10: memref<12x16x4xbf16, #tpu.memory_space<vmem>>, %arg11: memref<10x16x4xbf16, #tpu.memory_space<vmem>>) attributes {dimension_semantics = [#tpu.dimension_semantics<parallel>, #tpu.dimension_semantics<parallel>], iteration_bounds = array<i64: 2, 2>, scalar_prefetch = 0 : i64, scratch_operands = 2 : i64, tpu.core_type = #tpu.core_type<tc>, window_params = [{transform_indices = @transform_0, window_bounds = array<i64: 1, 8, 16, 4>}, {transform_indices = @transform_1, window_bounds = array<i64: 1, 2, 16, 4>}, {transform_indices = @transform_2, window_bounds = array<i64: 1, 2, 16, 4>}, {pipeline_mode = #tpu.pipeline_mode<synchronous>, transform_indices = @transform_3, window_bounds = array<i64: 3, 12, 4>}, {pipeline_mode = #tpu.pipeline_mode<synchronous>, transform_indices = @transform_4, window_bounds = array<i64: 1, 4>}, {pipeline_mode = #tpu.pipeline_mode<synchronous>, transform_indices = @transform_5, window_bounds = array<i64: 3, 12, 4>}, {pipeline_mode = #tpu.pipeline_mode<synchronous>, transform_indices = @transform_6, window_bounds = array<i64: 1, 4>}, {transform_indices = @transform_7, window_bounds = array<i64: 1, 8, 16, 4>}]} {
    %c0 = arith.constant 0 : index
    %c0_0 = arith.constant 0 : index
    %c0_1 = arith.constant 0 : index
    %c0_2 = arith.constant 0 : index
    %0 = vector.load %arg2[%c0, %c0_0, %c0_1, %c0_2] : memref<1x8x16x4xf32, #tpu.memory_space<vmem>>, vector<1x8x16x4xf32>
    %1 = vector.shape_cast %0 : vector<1x8x16x4xf32> to vector<8x16x4xf32>
    %2 = arith.truncf %1 : vector<8x16x4xf32> to vector<8x16x4xbf16>
    %c2 = arith.constant 2 : index
    %c0_3 = arith.constant 0 : index
    %c0_4 = arith.constant 0 : index
    %3 = vector.load %arg10[%c2, %c0_3, %c0_4] : memref<12x16x4xbf16, #tpu.memory_space<vmem>>, vector<8x16x4xbf16>
    tpu.vector_store %arg10[%c2, %c0_3, %c0_4], %2 {strides = array<i32>} : memref<12x16x4xbf16, #tpu.memory_space<vmem>>, vector<8x16x4xbf16>,
    %c0_5 = arith.constant 0 : index
    %c0_6 = arith.constant 0 : index
    %c0_7 = arith.constant 0 : index
    %c0_8 = arith.constant 0 : index
    %4 = vector.load %arg3[%c0_5, %c0_6, %c0_7, %c0_8] : memref<1x2x16x4xf32, #tpu.memory_space<vmem>>, vector<1x2x16x4xf32>
    %5 = vector.shape_cast %4 : vector<1x2x16x4xf32> to vector<2x16x4xf32>
    %6 = arith.truncf %5 : vector<2x16x4xf32> to vector<2x16x4xbf16>
    %c0_9 = arith.constant 0 : index
    %c0_10 = arith.constant 0 : index
    %c0_11 = arith.constant 0 : index
    %7 = vector.load %arg10[%c0_9, %c0_10, %c0_11] : memref<12x16x4xbf16, #tpu.memory_space<vmem>>, vector<2x16x4xbf16>
    tpu.vector_store %arg10[%c0_9, %c0_10, %c0_11], %6 {strides = array<i32>} : memref<12x16x4xbf16, #tpu.memory_space<vmem>>, vector<2x16x4xbf16>,
    %c0_12 = arith.constant 0 : index
    %c0_13 = arith.constant 0 : index
    %c0_14 = arith.constant 0 : index
    %c0_15 = arith.constant 0 : index
    %8 = vector.load %arg4[%c0_12, %c0_13, %c0_14, %c0_15] : memref<1x2x16x4xf32, #tpu.memory_space<vmem>>, vector<1x2x16x4xf32>
    %9 = vector.shape_cast %8 : vector<1x2x16x4xf32> to vector<2x16x4xf32>
    %10 = arith.truncf %9 : vector<2x16x4xf32> to vector<2x16x4xbf16>
    %c10 = arith.constant 10 : index
    %c0_16 = arith.constant 0 : index
    %c0_17 = arith.constant 0 : index
    %11 = vector.load %arg10[%c10, %c0_16, %c0_17] : memref<12x16x4xbf16, #tpu.memory_space<vmem>>, vector<2x16x4xbf16>
    tpu.vector_store %arg10[%c10, %c0_16, %c0_17], %10 {strides = array<i32>} : memref<12x16x4xbf16, #tpu.memory_space<vmem>>, vector<2x16x4xbf16>,
    %c0_i32 = arith.constant 0 : i32
    %12 = arith.cmpi eq, %arg1, %c0_i32 : i32
    %13 = arith.extui %12 : i1 to i32
    %c0_i32_18 = arith.constant 0 : i32
    %14 = arith.cmpi ne, %13, %c0_i32_18 : i32
    scf.if %14 {
      %cst_73 = arith.constant 0.000000e+00 : bf16
      %96 = vector.broadcast %cst_73 : bf16 to vector<2x16x4xbf16>
      %c0_74 = arith.constant 0 : index
      %c0_75 = arith.constant 0 : index
      %c0_76 = arith.constant 0 : index
      %97 = vector.load %arg10[%c0_74, %c0_75, %c0_76] : memref<12x16x4xbf16, #tpu.memory_space<vmem>>, vector<2x16x4xbf16>
      tpu.vector_store %arg10[%c0_74, %c0_75, %c0_76], %96 {strides = array<i32>} : memref<12x16x4xbf16, #tpu.memory_space<vmem>>, vector<2x16x4xbf16>,
    } else {
    }
    %c1_i32 = arith.constant 1 : i32
    %15 = arith.cmpi eq, %arg1, %c1_i32 : i32
    %16 = arith.extui %15 : i1 to i32
    %c0_i32_19 = arith.constant 0 : i32
    %17 = arith.cmpi ne, %16, %c0_i32_19 : i32
    scf.if %17 {
      %cst_73 = arith.constant 0.000000e+00 : bf16
      %96 = vector.broadcast %cst_73 : bf16 to vector<2x16x4xbf16>
      %c10_74 = arith.constant 10 : index
      %c0_75 = arith.constant 0 : index
      %c0_76 = arith.constant 0 : index
      %97 = vector.load %arg10[%c10_74, %c0_75, %c0_76] : memref<12x16x4xbf16, #tpu.memory_space<vmem>>, vector<2x16x4xbf16>
      tpu.vector_store %arg10[%c10_74, %c0_75, %c0_76], %96 {strides = array<i32>} : memref<12x16x4xbf16, #tpu.memory_space<vmem>>, vector<2x16x4xbf16>,
    } else {
    }
    %c0_20 = arith.constant 0 : index
    %c0_21 = arith.constant 0 : index
    %c0_22 = arith.constant 0 : index
    %18 = vector.load %arg10[%c0_20, %c0_21, %c0_22] : memref<12x16x4xbf16, #tpu.memory_space<vmem>>, vector<12x16x4xbf16>
    %cst = arith.constant 0.000000e+00 : bf16
    %19 = vector.broadcast %cst : bf16 to vector<12x1x4xbf16>
    %20 = vector.extract_strided_slice %18 {offsets = [0, 0, 0], sizes = [12, 15, 4], strides = [1, 1, 1]} : vector<12x16x4xbf16> to vector<12x15x4xbf16>
    %21 = tpu.concatenate %19, %20 in 1 : vector<12x1x4xbf16>, vector<12x15x4xbf16> -> vector<12x16x4xbf16>
    %22 = vector.extract_strided_slice %18 {offsets = [0, 1, 0], sizes = [12, 15, 4], strides = [1, 1, 1]} : vector<12x16x4xbf16> to vector<12x15x4xbf16>
    %23 = tpu.concatenate %22, %19 in 1 : vector<12x15x4xbf16>, vector<12x1x4xbf16> -> vector<12x16x4xbf16>
    %cst_23 = arith.constant 0.000000e+00 : f32
    %24 = vector.broadcast %cst_23 : f32 to vector<160x4xf32>
    %25 = tpu.concatenate %21, %18, %23 in 2 : vector<12x16x4xbf16>, vector<12x16x4xbf16>, vector<12x16x4xbf16> -> vector<12x16x12xbf16>
    %26 = vector.extract_strided_slice %25 {offsets = [0, 0, 0], sizes = [10, 16, 12], strides = [1, 1, 1]} : vector<12x16x12xbf16> to vector<10x16x12xbf16>
    %27 = vector.shape_cast %26 : vector<10x16x12xbf16> to vector<160x12xbf16>
    %c0_24 = arith.constant 0 : index
    %c0_25 = arith.constant 0 : index
    %c0_26 = arith.constant 0 : index
    %28 = vector.load %arg5[%c0_24, %c0_25, %c0_26] : memref<3x12x4xbf16, #tpu.memory_space<vmem>>, vector<1x12x4xbf16>
    %29 = vector.shape_cast %28 : vector<1x12x4xbf16> to vector<12x4xbf16>
    %cst_27 = arith.constant dense<0.000000e+00> : vector<160x4xf32>
    %30 = tpu.matmul %27, %29, %cst_27 {dimension_numbers = #tpu.dot_dimension_numbers<[1], [0], [0], [1], [0, 0, 1, 1], [], []>} : vector<160x12xbf16>, vector<12x4xbf16>, vector<160x4xf32> -> vector<160x4xf32>
    %31 = arith.addf %24, %30 : vector<160x4xf32>
    %32 = vector.extract_strided_slice %25 {offsets = [1, 0, 0], sizes = [10, 16, 12], strides = [1, 1, 1]} : vector<12x16x12xbf16> to vector<10x16x12xbf16>
    %33 = vector.shape_cast %32 : vector<10x16x12xbf16> to vector<160x12xbf16>
    %c1 = arith.constant 1 : index
    %c0_28 = arith.constant 0 : index
    %c0_29 = arith.constant 0 : index
    %34 = vector.load %arg5[%c1, %c0_28, %c0_29] : memref<3x12x4xbf16, #tpu.memory_space<vmem>>, vector<1x12x4xbf16>
    %35 = vector.shape_cast %34 : vector<1x12x4xbf16> to vector<12x4xbf16>
    %cst_30 = arith.constant dense<0.000000e+00> : vector<160x4xf32>
    %36 = tpu.matmul %33, %35, %cst_30 {dimension_numbers = #tpu.dot_dimension_numbers<[1], [0], [0], [1], [0, 0, 1, 1], [], []>} : vector<160x12xbf16>, vector<12x4xbf16>, vector<160x4xf32> -> vector<160x4xf32>
    %37 = arith.addf %31, %36 : vector<160x4xf32>
    %38 = vector.extract_strided_slice %25 {offsets = [2, 0, 0], sizes = [10, 16, 12], strides = [1, 1, 1]} : vector<12x16x12xbf16> to vector<10x16x12xbf16>
    %39 = vector.shape_cast %38 : vector<10x16x12xbf16> to vector<160x12xbf16>
    %c2_31 = arith.constant 2 : index
    %c0_32 = arith.constant 0 : index
    %c0_33 = arith.constant 0 : index
    %40 = vector.load %arg5[%c2_31, %c0_32, %c0_33] : memref<3x12x4xbf16, #tpu.memory_space<vmem>>, vector<1x12x4xbf16>
    %41 = vector.shape_cast %40 : vector<1x12x4xbf16> to vector<12x4xbf16>
    %cst_34 = arith.constant dense<0.000000e+00> : vector<160x4xf32>
    %42 = tpu.matmul %39, %41, %cst_34 {dimension_numbers = #tpu.dot_dimension_numbers<[1], [0], [0], [1], [0, 0, 1, 1], [], []>} : vector<160x12xbf16>, vector<12x4xbf16>, vector<160x4xf32> -> vector<160x4xf32>
    %43 = arith.addf %37, %42 : vector<160x4xf32>
    %c0_35 = arith.constant 0 : index
    %c0_36 = arith.constant 0 : index
    %44 = vector.load %arg6[%c0_35, %c0_36] : memref<1x4xf32, #tpu.memory_space<vmem>>, vector<1x4xf32>
    %45 = vector.broadcast %44 : vector<1x4xf32> to vector<160x4xf32>
    %46 = arith.addf %43, %45 : vector<160x4xf32>
    %47 = vector.shape_cast %46 : vector<160x4xf32> to vector<10x16x4xf32>
    %cst_37 = arith.constant 0.000000e+00 : f32
    %48 = vector.broadcast %cst_37 : f32 to vector<10x16x4xf32>
    %49 = arith.maximumf %47, %48 : vector<10x16x4xf32>
    %50 = arith.truncf %49 : vector<10x16x4xf32> to vector<10x16x4xbf16>
    %c0_38 = arith.constant 0 : index
    %c0_39 = arith.constant 0 : index
    %c0_40 = arith.constant 0 : index
    %51 = vector.load %arg11[%c0_38, %c0_39, %c0_40] : memref<10x16x4xbf16, #tpu.memory_space<vmem>>, vector<10x16x4xbf16>
    tpu.vector_store %arg11[%c0_38, %c0_39, %c0_40], %50 {strides = array<i32>} : memref<10x16x4xbf16, #tpu.memory_space<vmem>>, vector<10x16x4xbf16>,
    %c0_i32_41 = arith.constant 0 : i32
    %52 = arith.cmpi eq, %arg1, %c0_i32_41 : i32
    %53 = arith.extui %52 : i1 to i32
    %c0_i32_42 = arith.constant 0 : i32
    %54 = arith.cmpi ne, %53, %c0_i32_42 : i32
    scf.if %54 {
      %cst_73 = arith.constant 0.000000e+00 : bf16
      %96 = vector.broadcast %cst_73 : bf16 to vector<1x16x4xbf16>
      %c0_74 = arith.constant 0 : index
      %c0_75 = arith.constant 0 : index
      %c0_76 = arith.constant 0 : index
      %97 = vector.load %arg11[%c0_74, %c0_75, %c0_76] : memref<10x16x4xbf16, #tpu.memory_space<vmem>>, vector<1x16x4xbf16>
      tpu.vector_store %arg11[%c0_74, %c0_75, %c0_76], %96 {strides = array<i32>} : memref<10x16x4xbf16, #tpu.memory_space<vmem>>, vector<1x16x4xbf16>,
    } else {
    }
    %c1_i32_43 = arith.constant 1 : i32
    %55 = arith.cmpi eq, %arg1, %c1_i32_43 : i32
    %56 = arith.extui %55 : i1 to i32
    %c0_i32_44 = arith.constant 0 : i32
    %57 = arith.cmpi ne, %56, %c0_i32_44 : i32
    scf.if %57 {
      %cst_73 = arith.constant 0.000000e+00 : bf16
      %96 = vector.broadcast %cst_73 : bf16 to vector<1x16x4xbf16>
      %c9 = arith.constant 9 : index
      %c0_74 = arith.constant 0 : index
      %c0_75 = arith.constant 0 : index
      %97 = vector.load %arg11[%c9, %c0_74, %c0_75] : memref<10x16x4xbf16, #tpu.memory_space<vmem>>, vector<1x16x4xbf16>
      tpu.vector_store %arg11[%c9, %c0_74, %c0_75], %96 {strides = array<i32>} : memref<10x16x4xbf16, #tpu.memory_space<vmem>>, vector<1x16x4xbf16>,
    } else {
    }
    %c0_45 = arith.constant 0 : index
    %c0_46 = arith.constant 0 : index
    %c0_47 = arith.constant 0 : index
    %58 = vector.load %arg11[%c0_45, %c0_46, %c0_47] : memref<10x16x4xbf16, #tpu.memory_space<vmem>>, vector<10x16x4xbf16>
    %cst_48 = arith.constant 0.000000e+00 : bf16
    %59 = vector.broadcast %cst_48 : bf16 to vector<10x1x4xbf16>
    %60 = vector.extract_strided_slice %58 {offsets = [0, 0, 0], sizes = [10, 15, 4], strides = [1, 1, 1]} : vector<10x16x4xbf16> to vector<10x15x4xbf16>
    %61 = tpu.concatenate %59, %60 in 1 : vector<10x1x4xbf16>, vector<10x15x4xbf16> -> vector<10x16x4xbf16>
    %62 = vector.extract_strided_slice %58 {offsets = [0, 1, 0], sizes = [10, 15, 4], strides = [1, 1, 1]} : vector<10x16x4xbf16> to vector<10x15x4xbf16>
    %63 = tpu.concatenate %62, %59 in 1 : vector<10x15x4xbf16>, vector<10x1x4xbf16> -> vector<10x16x4xbf16>
    %cst_49 = arith.constant 0.000000e+00 : f32
    %64 = vector.broadcast %cst_49 : f32 to vector<128x4xf32>
    %65 = tpu.concatenate %61, %58, %63 in 2 : vector<10x16x4xbf16>, vector<10x16x4xbf16>, vector<10x16x4xbf16> -> vector<10x16x12xbf16>
    %66 = vector.extract_strided_slice %65 {offsets = [0, 0, 0], sizes = [8, 16, 12], strides = [1, 1, 1]} : vector<10x16x12xbf16> to vector<8x16x12xbf16>
    %67 = vector.shape_cast %66 : vector<8x16x12xbf16> to vector<128x12xbf16>
    %c0_50 = arith.constant 0 : index
    %c0_51 = arith.constant 0 : index
    %c0_52 = arith.constant 0 : index
    %68 = vector.load %arg7[%c0_50, %c0_51, %c0_52] : memref<3x12x4xbf16, #tpu.memory_space<vmem>>, vector<1x12x4xbf16>
    %69 = vector.shape_cast %68 : vector<1x12x4xbf16> to vector<12x4xbf16>
    %cst_53 = arith.constant dense<0.000000e+00> : vector<128x4xf32>
    %70 = tpu.matmul %67, %69, %cst_53 {dimension_numbers = #tpu.dot_dimension_numbers<[1], [0], [0], [1], [0, 0, 1, 1], [], []>} : vector<128x12xbf16>, vector<12x4xbf16>, vector<128x4xf32> -> vector<128x4xf32>
    %71 = arith.addf %64, %70 : vector<128x4xf32>
    %72 = vector.extract_strided_slice %65 {offsets = [1, 0, 0], sizes = [8, 16, 12], strides = [1, 1, 1]} : vector<10x16x12xbf16> to vector<8x16x12xbf16>
    %73 = vector.shape_cast %72 : vector<8x16x12xbf16> to vector<128x12xbf16>
    %c1_54 = arith.constant 1 : index
    %c0_55 = arith.constant 0 : index
    %c0_56 = arith.constant 0 : index
    %74 = vector.load %arg7[%c1_54, %c0_55, %c0_56] : memref<3x12x4xbf16, #tpu.memory_space<vmem>>, vector<1x12x4xbf16>
    %75 = vector.shape_cast %74 : vector<1x12x4xbf16> to vector<12x4xbf16>
    %cst_57 = arith.constant dense<0.000000e+00> : vector<128x4xf32>
    %76 = tpu.matmul %73, %75, %cst_57 {dimension_numbers = #tpu.dot_dimension_numbers<[1], [0], [0], [1], [0, 0, 1, 1], [], []>} : vector<128x12xbf16>, vector<12x4xbf16>, vector<128x4xf32> -> vector<128x4xf32>
    %77 = arith.addf %71, %76 : vector<128x4xf32>
    %78 = vector.extract_strided_slice %65 {offsets = [2, 0, 0], sizes = [8, 16, 12], strides = [1, 1, 1]} : vector<10x16x12xbf16> to vector<8x16x12xbf16>
    %79 = vector.shape_cast %78 : vector<8x16x12xbf16> to vector<128x12xbf16>
    %c2_58 = arith.constant 2 : index
    %c0_59 = arith.constant 0 : index
    %c0_60 = arith.constant 0 : index
    %80 = vector.load %arg7[%c2_58, %c0_59, %c0_60] : memref<3x12x4xbf16, #tpu.memory_space<vmem>>, vector<1x12x4xbf16>
    %81 = vector.shape_cast %80 : vector<1x12x4xbf16> to vector<12x4xbf16>
    %cst_61 = arith.constant dense<0.000000e+00> : vector<128x4xf32>
    %82 = tpu.matmul %79, %81, %cst_61 {dimension_numbers = #tpu.dot_dimension_numbers<[1], [0], [0], [1], [0, 0, 1, 1], [], []>} : vector<128x12xbf16>, vector<12x4xbf16>, vector<128x4xf32> -> vector<128x4xf32>
    %83 = arith.addf %77, %82 : vector<128x4xf32>
    %c0_62 = arith.constant 0 : index
    %c0_63 = arith.constant 0 : index
    %84 = vector.load %arg8[%c0_62, %c0_63] : memref<1x4xf32, #tpu.memory_space<vmem>>, vector<1x4xf32>
    %85 = vector.broadcast %84 : vector<1x4xf32> to vector<128x4xf32>
    %86 = arith.addf %83, %85 : vector<128x4xf32>
    %87 = vector.shape_cast %86 : vector<128x4xf32> to vector<8x16x4xf32>
    %cst_64 = arith.constant 1.000000e+00 : f32
    %88 = vector.broadcast %cst_64 : f32 to vector<8x16x4xf32>
    %89 = arith.mulf %87, %88 : vector<8x16x4xf32>
    %c0_65 = arith.constant 0 : index
    %c0_66 = arith.constant 0 : index
    %c0_67 = arith.constant 0 : index
    %c0_68 = arith.constant 0 : index
    %90 = vector.load %arg2[%c0_65, %c0_66, %c0_67, %c0_68] : memref<1x8x16x4xf32, #tpu.memory_space<vmem>>, vector<1x8x16x4xf32>
    %91 = vector.shape_cast %90 : vector<1x8x16x4xf32> to vector<8x16x4xf32>
    %92 = arith.addf %89, %91 : vector<8x16x4xf32>
    %c0_69 = arith.constant 0 : index
    %c0_70 = arith.constant 0 : index
    %c0_71 = arith.constant 0 : index
    %c0_72 = arith.constant 0 : index
    %93 = vector.load %arg9[%c0_69, %c0_70, %c0_71, %c0_72] : memref<1x8x16x4xf32, #tpu.memory_space<vmem>>, vector<1x8x16x4xf32>
    %94 = vector.shape_cast %93 : vector<1x8x16x4xf32> to vector<8x16x4xf32>
    %95 = vector.shape_cast %92 : vector<8x16x4xf32> to vector<1x8x16x4xf32>
    tpu.vector_store %arg9[%c0_69, %c0_70, %c0_71, %c0_72], %95 {strides = array<i32>} : memref<1x8x16x4xf32, #tpu.memory_space<vmem>>, vector<1x8x16x4xf32>,
    return
  }
  func.func @transform_0(%arg0: i32, %arg1: i32) -> (i32, i32, i32, i32) {
    %c0_i32 = arith.constant 0 : i32
    %c0_i32_0 = arith.constant 0 : i32
    %c0_i32_1 = arith.constant 0 : i32
    return %arg0, %arg1, %c0_i32, %c0_i32_0 : i32, i32, i32, i32
  }
  func.func @transform_1(%arg0: i32, %arg1: i32) -> (i32, i32, i32, i32) {
    %c4_i32 = arith.constant 4 : i32
    %0 = arith.muli %arg1, %c4_i32 : i32
    %c1_i32 = arith.constant 1 : i32
    %1 = arith.subi %0, %c1_i32 : i32
    %c0_i32 = arith.constant 0 : i32
    %2 = arith.maxsi %1, %c0_i32 : i32
    %c0_i32_0 = arith.constant 0 : i32
    %c0_i32_1 = arith.constant 0 : i32
    %c0_i32_2 = arith.constant 0 : i32
    return %arg0, %2, %c0_i32_0, %c0_i32_1 : i32, i32, i32, i32
  }
  func.func @transform_2(%arg0: i32, %arg1: i32) -> (i32, i32, i32, i32) {
    %c1_i32 = arith.constant 1 : i32
    %0 = arith.addi %arg1, %c1_i32 : i32
    %c4_i32 = arith.constant 4 : i32
    %1 = arith.muli %0, %c4_i32 : i32
    %c7_i32 = arith.constant 7 : i32
    %2 = arith.minsi %1, %c7_i32 : i32
    %c0_i32 = arith.constant 0 : i32
    %c0_i32_0 = arith.constant 0 : i32
    %c0_i32_1 = arith.constant 0 : i32
    return %arg0, %2, %c0_i32, %c0_i32_0 : i32, i32, i32, i32
  }
  func.func @transform_3(%arg0: i32, %arg1: i32) -> (i32, i32, i32) {
    %c0_i32 = arith.constant 0 : i32
    %c0_i32_0 = arith.constant 0 : i32
    %c0_i32_1 = arith.constant 0 : i32
    %c0_i32_2 = arith.constant 0 : i32
    return %c0_i32, %c0_i32_0, %c0_i32_1 : i32, i32, i32
  }
  func.func @transform_4(%arg0: i32, %arg1: i32) -> (i32, i32) {
    %c0_i32 = arith.constant 0 : i32
    %c0_i32_0 = arith.constant 0 : i32
    %c0_i32_1 = arith.constant 0 : i32
    return %c0_i32, %c0_i32_0 : i32, i32
  }
  func.func @transform_5(%arg0: i32, %arg1: i32) -> (i32, i32, i32) {
    %c0_i32 = arith.constant 0 : i32
    %c0_i32_0 = arith.constant 0 : i32
    %c0_i32_1 = arith.constant 0 : i32
    %c0_i32_2 = arith.constant 0 : i32
    return %c0_i32, %c0_i32_0, %c0_i32_1 : i32, i32, i32
  }
  func.func @transform_6(%arg0: i32, %arg1: i32) -> (i32, i32) {
    %c0_i32 = arith.constant 0 : i32
    %c0_i32_0 = arith.constant 0 : i32
    %c0_i32_1 = arith.constant 0 : i32
    return %c0_i32, %c0_i32_0 : i32, i32
  }
  func.func @transform_7(%arg0: i32, %arg1: i32) -> (i32, i32, i32, i32) {
    %c0_i32 = arith.constant 0 : i32
    %c0_i32_0 = arith.constant 0 : i32
    %c0_i32_1 = arith.constant 0 : i32
    return %arg0, %arg1, %c0_i32, %c0_i32_0 : i32, i32, i32, i32
  }
}

</mosaic_0001>

<llo_original>
// kernel: tpu_custom_call.1
$region0: #{tpu_custom_call.1}
  #allocation0 [shape = 'u32[]', space=smem, size = 0x4, offset = 0x4, fixed_abs, tag = 'smem constant byte address 0x4 - core index']
  #allocation1 [shape = 'u32[72,128]{1,0:T(1,128)}', space=vmem, size = 0x9000, scoped, tag = 'internal scratch']
  #allocation2 [shape = 'bf16[12,16,4]{2,1,0:T(8,128)(2,1)}', space=vmem, size = 0xc000, scoped, tag = 'scratch operand']
  #allocation3 [shape = 'bf16[10,16,4]{2,1,0:T(8,128)(2,1)}', space=vmem, size = 0xa000, scoped, tag = 'scratch operand']
  %s0 = inlined_call_operand.vmem [shape: f32[2,16,16,4], index: 0, kind: input, shape index: {}]
  %s1 = inlined_call_operand.vmem [shape: f32[2,16,16,4], index: 1, kind: input, shape index: {}]
  %s2 = inlined_call_operand.vmem [shape: f32[2,16,16,4], index: 2, kind: input, shape index: {}]
  %s3 = inlined_call_operand.vmem [shape: bf16[3,12,4], index: 3, kind: input, shape index: {}]
  %s4 = inlined_call_operand.vmem [shape: f32[1,4], index: 4, kind: input, shape index: {}]
  %s5 = inlined_call_operand.vmem [shape: bf16[3,12,4], index: 5, kind: input, shape index: {}]
  %s6 = inlined_call_operand.vmem [shape: f32[1,4], index: 6, kind: input, shape index: {}]
  %s7 = inlined_call_operand.vmem [shape: f32[2,16,16,4], index: 7, kind: output, shape index: {}]
  %s8 = sld [smem:[#allocation0]]
  $region77: #{tpu_custom_call.1} parent=0
    _
  %s10 = ssub.s32 1, %s8
  %s11 = scalar_select 0, %s10, %s8
  loop: start=0, step=1, limit=6
  $region2: #{tpu_custom_call.1} parent=0 // loop_pre_header
    _
  $region3: #{tpu_custom_call.1} parent=0 // loop_header
    %s13 = sphi 0, %s17
    %p14 = scmp.ge.s32.totalorder %s13, 6
    %s20 = sphi 0, %s32
    %s21 = sphi 0, %s28
    %s22 = sphi 0, %s20
    %s23 = sphi 0, %s21
    %s24 = sphi 0, %s22
    %s25 = sphi 0, %s23
    %s37 = sphi 0, %s39
    %s40 = sphi 0, %s37
    %s41 = sphi 0, %s40
    %s57 = sphi 0, %s41
    %s73 = sphi 0, %s75
    %s76 = sphi 0, %s73
    %s77 = sphi 0, %s76
    %s93 = sphi 0, %s77
    %s109 = sphi 0, %s111
    %s112 = sphi 0, %s109
    %s113 = sphi 0, %s112
    %s129 = sphi 0, %s113
    %s133 = sphi 0, %s133
    %s135 = sphi 0, %s133
    %s136 = sphi 0, %s135
    %s150 = sphi 0, %s136
    %s154 = sphi 0, %s154
    %s156 = sphi 0, %s154
    %s157 = sphi 0, %s156
    %s171 = sphi 0, %s157
    %s175 = sphi 0, %s175
    %s177 = sphi 0, %s175
    %s178 = sphi 0, %s177
    %s192 = sphi 0, %s178
    %s196 = sphi 0, %s196
    %s198 = sphi 0, %s196
    %s199 = sphi 0, %s198
    %s213 = sphi 0, %s199
    %s221 = sphi 0, %s223
    %s224 = sphi 0, %s221
    %s225 = sphi 0, %s224
    %s241 = sphi 0, %s225
  $region4: #{tpu_custom_call.1} parent=0 // loop_header_branch
    %16 = sbr.rel (%p14) target = $region8
  $region5: #{tpu_custom_call.1} parent=0 // loop_body
    %s18 = ssub.s32 %s13, 1
    %s19 = ssub.s32 %s13, 2
    %s26 = sadd.s32 1, %s21
    %p27 = scmp.ge.s32.totalorder %s26, 2
    %s28 = scalar_select %p27, 0, %s26
    %s29 = sadd.s32 1, %s20
    %s30 = scalar_select %p27, %s29, %s20
    %p31 = scmp.ge.s32.totalorder %s30, 2
    %s32 = scalar_select %p31, 0, %s30
    %s33 = ssub.s32 %s20, %s32
    %s34 = ssub.s32 %s21, %s28
    %s35 = sor.u32 %s33, %s34
    %p36 = scmp.eq.s32.totalorder %s35, 0
    %s38 = sadd.s32 %s37, 1
    %s39 = scalar_select %p36, %s37, %s38
    %p42 = pneg %p36
    %p43 = scmp.eq.s32.totalorder %s13, 3
    %p44 = por %p42, %p43
    %p45 = scmp.ne.s32.totalorder %s37, %s40
    %p46 = scmp.eq.s32.totalorder %s13, 0
    %p47 = por %p45, %p46
    %p48 = scmp.ne.s32.totalorder %s37, %s40
    %p49 = scmp.eq.s32.totalorder %s18, 3
    %p50 = por %p48, %p49
    %p51 = scmp.ne.s32.totalorder %s40, %s41
    %p52 = scmp.eq.s32.totalorder %s18, 0
    %p53 = por %p51, %p52
    %p54 = scmp.ne.s32.totalorder %s40, %s41
    %p55 = scmp.eq.s32.totalorder %s19, 3
    %p56 = por %p54, %p55
    %p58 = scmp.ne.s32.totalorder %s41, %s57
    %p59 = scmp.eq.s32.totalorder %s19, 0
    %p60 = por %p58, %p59
    %s61 = smul.u32 %s21, 4
    %s62 = ssub.s32 %s61, 1
    %p63 = scmp.gt.s32.totalorder %s62, 0
    %s64 = scalar_select %p63, %s62, 0
    %s65 = smul.u32 %s28, 4
    %s66 = ssub.s32 %s65, 1
    %p67 = scmp.gt.s32.totalorder %s66, 0
    %s68 = scalar_select %p67, %s66, 0
    %s69 = ssub.s32 %s20, %s32
    %s70 = ssub.s32 %s64, %s68
    %s71 = sor.u32 %s69, %s70
    %p72 = scmp.eq.s32.totalorder %s71, 0
    %s74 = sadd.s32 %s73, 1
    %s75 = scalar_select %p72, %s73, %s74
    %p78 = pneg %p72
    %p79 = scmp.eq.s32.totalorder %s13, 3
    %p80 = por %p78, %p79
    %p81 = scmp.ne.s32.totalorder %s73, %s76
    %p82 = scmp.eq.s32.totalorder %s13, 0
    %p83 = por %p81, %p82
    %p84 = scmp.ne.s32.totalorder %s73, %s76
    %p85 = scmp.eq.s32.totalorder %s18, 3
    %p86 = por %p84, %p85
    %p87 = scmp.ne.s32.totalorder %s76, %s77
    %p88 = scmp.eq.s32.totalorder %s18, 0
    %p89 = por %p87, %p88
    %p90 = scmp.ne.s32.totalorder %s76, %s77
    %p91 = scmp.eq.s32.totalorder %s19, 3
    %p92 = por %p90, %p91
    %p94 = scmp.ne.s32.totalorder %s77, %s93
    %p95 = scmp.eq.s32.totalorder %s19, 0
    %p96 = por %p94, %p95
    %s97 = sadd.s32 %s21, 1
    %s98 = smul.u32 %s97, 4
    %p99 = scmp.lt.s32.totalorder %s98, 7
    %s100 = scalar_select %p99, %s98, 7
    %s101 = sadd.s32 %s28, 1
    %s102 = smul.u32 %s101, 4
    %p103 = scmp.lt.s32.totalorder %s102, 7
    %s104 = scalar_select %p103, %s102, 7
    %s105 = ssub.s32 %s20, %s32
    %s106 = ssub.s32 %s100, %s104
    %s107 = sor.u32 %s105, %s106
    %p108 = scmp.eq.s32.totalorder %s107, 0
    %s110 = sadd.s32 %s109, 1
    %s111 = scalar_select %p108, %s109, %s110
    %p114 = pneg %p108
    %p115 = scmp.eq.s32.totalorder %s13, 3
    %p116 = por %p114, %p115
    %p117 = scmp.ne.s32.totalorder %s109, %s112
    %p118 = scmp.eq.s32.totalorder %s13, 0
    %p119 = por %p117, %p118
    %p120 = scmp.ne.s32.totalorder %s109, %s112
    %p121 = scmp.eq.s32.totalorder %s18, 3
    %p122 = por %p120, %p121
    %p123 = scmp.ne.s32.totalorder %s112, %s113
    %p124 = scmp.eq.s32.totalorder %s18, 0
    %p125 = por %p123, %p124
    %p126 = scmp.ne.s32.totalorder %s112, %s113
    %p127 = scmp.eq.s32.totalorder %s19, 3
    %p128 = por %p126, %p127
    %p130 = scmp.ne.s32.totalorder %s113, %s129
    %p131 = scmp.eq.s32.totalorder %s19, 0
    %p132 = por %p130, %p131
    %s134 = sadd.s32 %s133, 1
    %p137 = scmp.eq.s32.totalorder %s13, 3
    %p138 = scmp.ne.s32.totalorder %s133, %s135
    %p139 = scmp.eq.s32.totalorder %s13, 0
    %p140 = por %p138, %p139
    %p141 = scmp.ne.s32.totalorder %s133, %s135
    %p142 = scmp.eq.s32.totalorder %s18, 3
    %p143 = por %p141, %p142
    %p144 = scmp.ne.s32.totalorder %s135, %s136
    %p145 = scmp.eq.s32.totalorder %s18, 0
    %p146 = por %p144, %p145
    %p147 = scmp.ne.s32.totalorder %s135, %s136
    %p148 = scmp.eq.s32.totalorder %s19, 3
    %p149 = por %p147, %p148
    %p151 = scmp.ne.s32.totalorder %s136, %s150
    %p152 = scmp.eq.s32.totalorder %s19, 0
    %p153 = por %p151, %p152
    %s155 = sadd.s32 %s154, 1
    %p158 = scmp.eq.s32.totalorder %s13, 3
    %p159 = scmp.ne.s32.totalorder %s154, %s156
    %p160 = scmp.eq.s32.totalorder %s13, 0
    %p161 = por %p159, %p160
    %p162 = scmp.ne.s32.totalorder %s154, %s156
    %p163 = scmp.eq.s32.totalorder %s18, 3
    %p164 = por %p162, %p163
    %p165 = scmp.ne.s32.totalorder %s156, %s157
    %p166 = scmp.eq.s32.totalorder %s18, 0
    %p167 = por %p165, %p166
    %p168 = scmp.ne.s32.totalorder %s156, %s157
    %p169 = scmp.eq.s32.totalorder %s19, 3
    %p170 = por %p168, %p169
    %p172 = scmp.ne.s32.totalorder %s157, %s171
    %p173 = scmp.eq.s32.totalorder %s19, 0
    %p174 = por %p172, %p173
    %s176 = sadd.s32 %s175, 1
    %p179 = scmp.eq.s32.totalorder %s13, 3
    %p180 = scmp.ne.s32.totalorder %s175, %s177
    %p181 = scmp.eq.s32.totalorder %s13, 0
    %p182 = por %p180, %p181
    %p183 = scmp.ne.s32.totalorder %s175, %s177
    %p184 = scmp.eq.s32.totalorder %s18, 3
    %p185 = por %p183, %p184
    %p186 = scmp.ne.s32.totalorder %s177, %s178
    %p187 = scmp.eq.s32.totalorder %s18, 0
    %p188 = por %p186, %p187
    %p189 = scmp.ne.s32.totalorder %s177, %s178
    %p190 = scmp.eq.s32.totalorder %s19, 3
    %p191 = por %p189, %p190
    %p193 = scmp.ne.s32.totalorder %s178, %s192
    %p194 = scmp.eq.s32.totalorder %s19, 0
    %p195 = por %p193, %p194
    %s197 = sadd.s32 %s196, 1
    %p200 = scmp.eq.s32.totalorder %s13, 3
    %p201 = scmp.ne.s32.totalorder %s196, %s198
    %p202 = scmp.eq.s32.totalorder %s13, 0
    %p203 = por %p201, %p202
    %p204 = scmp.ne.s32.totalorder %s196, %s198
    %p205 = scmp.eq.s32.totalorder %s18, 3
    %p206 = por %p204, %p205
    %p207 = scmp.ne.s32.totalorder %s198, %s199
    %p208 = scmp.eq.s32.totalorder %s18, 0
    %p209 = por %p207, %p208
    %p210 = scmp.ne.s32.totalorder %s198, %s199
    %p211 = scmp.eq.s32.totalorder %s19, 3
    %p212 = por %p210, %p211
    %p214 = scmp.ne.s32.totalorder %s199, %s213
    %p215 = scmp.eq.s32.totalorder %s19, 0
    %p216 = por %p214, %p215
    %s217 = ssub.s32 %s20, %s32
    %s218 = ssub.s32 %s21, %s28
    %s219 = sor.u32 %s217, %s218
    %p220 = scmp.eq.s32.totalorder %s219, 0
    %s222 = sadd.s32 %s221, 1
    %s223 = scalar_select %p220, %s221, %s222
    %p226 = pneg %p220
    %p227 = scmp.eq.s32.totalorder %s13, 3
    %p228 = por %p226, %p227
    %p229 = scmp.ne.s32.totalorder %s221, %s224
    %p230 = scmp.eq.s32.totalorder %s13, 0
    %p231 = por %p229, %p230
    %p232 = scmp.ne.s32.totalorder %s221, %s224
    %p233 = scmp.eq.s32.totalorder %s18, 3
    %p234 = por %p232, %p233
    %p235 = scmp.ne.s32.totalorder %s224, %s225
    %p236 = scmp.eq.s32.totalorder %s18, 0
    %p237 = por %p235, %p236
    %p238 = scmp.ne.s32.totalorder %s224, %s225
    %p239 = scmp.eq.s32.totalorder %s19, 3
    %p240 = por %p238, %p239
    %p242 = scmp.ne.s32.totalorder %s225, %s241
    %p243 = scmp.eq.s32.totalorder %s19, 0
    %p244 = por %p242, %p243
    %p245 = scmp.le.s32.totalorder 1, %s13
    %p246 = scmp.lt.s32.totalorder %s13, 5
    %p247 = pnand %p245, %p246
    %p248 = pneg %p247
    // Predicated region
    $region9: #{tpu_custom_call.1} parent=5 // pred_check
      _
    $region10: #{tpu_custom_call.1} parent=5 // pred_check_branch
      %250 = sbr.rel (%p247) target = $region12
    $region11: #{tpu_custom_call.1} parent=5 // pred_region
      %s251 = ssub.s32 %s13, 1
      // Predicated region
      $region13: #{tpu_custom_call.1} parent=11 // pred_check
        %p252 = pneg %p146
      $region14: #{tpu_custom_call.1} parent=11 // pred_check_branch
        %254 = sbr.rel (%p252) target = $region16
      $region15: #{tpu_custom_call.1} parent=11 // pred_region
        _
      $region16: #{tpu_custom_call.1} parent=11 // pred_fallthru
        _
      // Predicated region
      $region17: #{tpu_custom_call.1} parent=11 // pred_check
        %p255 = pneg %p167
      $region18: #{tpu_custom_call.1} parent=11 // pred_check_branch
        %257 = sbr.rel (%p255) target = $region20
      $region19: #{tpu_custom_call.1} parent=11 // pred_region
        _
      $region20: #{tpu_custom_call.1} parent=11 // pred_fallthru
        _
      // Predicated region
      $region21: #{tpu_custom_call.1} parent=11 // pred_check
        %p258 = pneg %p188
      $region22: #{tpu_custom_call.1} parent=11 // pred_check_branch
        %260 = sbr.rel (%p258) target = $region24
      $region23: #{tpu_custom_call.1} parent=11 // pred_region
        _
      $region24: #{tpu_custom_call.1} parent=11 // pred_fallthru
        _
      // Predicated region
      $region25: #{tpu_custom_call.1} parent=11 // pred_check
        %p261 = pneg %p209
      $region26: #{tpu_custom_call.1} parent=11 // pred_check_branch
        %263 = sbr.rel (%p261) target = $region28
      $region27: #{tpu_custom_call.1} parent=11 // pred_region
        _
      $region28: #{tpu_custom_call.1} parent=11 // pred_fallthru
        _
    $region12: #{tpu_custom_call.1} parent=5 // pred_fallthru
      _
    %p264 = scmp.lt.s32.totalorder %s13, 4
    // Predicated region
    $region29: #{tpu_custom_call.1} parent=5 // pred_check
      %p265 = pneg %p264
    $region30: #{tpu_custom_call.1} parent=5 // pred_check_branch
      %267 = sbr.rel (%p265) target = $region32
    $region31: #{tpu_custom_call.1} parent=5 // pred_region
      // Predicated region
      $region33: #{tpu_custom_call.1} parent=31 // pred_check
        %p268 = pneg %p47
      $region34: #{tpu_custom_call.1} parent=31 // pred_check_branch
        %270 = sbr.rel (%p268) target = $region36
      $region35: #{tpu_custom_call.1} parent=31 // pred_region
        %s271 = smul.u32 8, %s21
        %p272 = scmp.lt.s32.totalorder %s20, 1
        %s273 = scalar_select %p272, %s20, 1
        %p274 = scmp.lt.s32.totalorder %s271, 15
        %s275 = scalar_select %p274, %s271, 15
        %s276 = smul.addr %s275, 2
        %s277 = smul.addr %s273, 32
        %s278 = sadd.s32 %s276, %s277
        %s279 = smul.addr %s278, 8
        %s280 = scalar_lea.vmem %s0, %s279
        %s281 = smul.u32 8, %s21
      $region36: #{tpu_custom_call.1} parent=31 // pred_fallthru
        _
      // Predicated region
      $region37: #{tpu_custom_call.1} parent=31 // pred_check
        %p282 = pneg %p83
      $region38: #{tpu_custom_call.1} parent=31 // pred_check_branch
        %284 = sbr.rel (%p282) target = $region40
      $region39: #{tpu_custom_call.1} parent=31 // pred_region
        %s285 = smul.u32 %s21, 4
        %s286 = ssub.s32 %s285, 1
        %p287 = scmp.gt.s32.totalorder %s286, 0
        %s288 = scalar_select %p287, %s286, 0
        %s289 = smul.u32 2, %s288
        %p290 = scmp.lt.s32.totalorder %s20, 1
        %s291 = scalar_select %p290, %s20, 1
        %p292 = scmp.lt.s32.totalorder %s289, 15
        %s293 = scalar_select %p292, %s289, 15
        %s294 = smul.addr %s293, 2
        %s295 = smul.addr %s291, 32
        %s296 = sadd.s32 %s294, %s295
        %s297 = smul.addr %s296, 8
        %s298 = scalar_lea.vmem %s1, %s297
        %s299 = smul.u32 %s21, 4
        %s300 = ssub.s32 %s299, 1
        %p301 = scmp.gt.s32.totalorder %s300, 0
        %s302 = scalar_select %p301, %s300, 0
        %s303 = smul.u32 2, %s302
      $region40: #{tpu_custom_call.1} parent=31 // pred_fallthru
        _
      // Predicated region
      $region41: #{tpu_custom_call.1} parent=31 // pred_check
        %p304 = pneg %p119
      $region42: #{tpu_custom_call.1} parent=31 // pred_check_branch
        %306 = sbr.rel (%p304) target = $region44
      $region43: #{tpu_custom_call.1} parent=31 // pred_region
        %s307 = sadd.s32 %s21, 1
        %s308 = smul.u32 %s307, 4
        %p309 = scmp.lt.s32.totalorder %s308, 7
        %s310 = scalar_select %p309, %s308, 7
        %s311 = smul.u32 2, %s310
        %p312 = scmp.lt.s32.totalorder %s20, 1
        %s313 = scalar_select %p312, %s20, 1
        %p314 = scmp.lt.s32.totalorder %s311, 15
        %s315 = scalar_select %p314, %s311, 15
        %s316 = smul.addr %s315, 2
        %s317 = smul.addr %s313, 32
        %s318 = sadd.s32 %s316, %s317
        %s319 = smul.addr %s318, 8
        %s320 = scalar_lea.vmem %s2, %s319
        %s321 = sadd.s32 %s21, 1
        %s322 = smul.u32 %s321, 4
        %p323 = scmp.lt.s32.totalorder %s322, 7
        %s324 = scalar_select %p323, %s322, 7
        %s325 = smul.u32 2, %s324
      $region44: #{tpu_custom_call.1} parent=31 // pred_fallthru
        _
    $region32: #{tpu_custom_call.1} parent=5 // pred_fallthru
      _
    %p326 = scmp.le.s32.totalorder 1, %s13
    %p327 = scmp.lt.s32.totalorder %s13, 5
    %p328 = pnand %p326, %p327
    %p329 = pneg %p328
    // Predicated region
    $region45: #{tpu_custom_call.1} parent=5 // pred_check
      _
    $region46: #{tpu_custom_call.1} parent=5 // pred_check_branch
      %331 = sbr.rel (%p328) target = $region48
    $region47: #{tpu_custom_call.1} parent=5 // pred_region
      %s332 = ssub.s32 %s13, 1
      %s333 = smul.u32 8, %s23
      %p334 = scmp.lt.s32.totalorder %s22, 1
      %s335 = scalar_select %p334, %s22, 1
      %p336 = scmp.lt.s32.totalorder %s333, 15
      %s337 = scalar_select %p336, %s333, 15
      %s338 = smul.addr %s337, 2
      %s339 = smul.addr %s335, 32
      %s340 = sadd.s32 %s338, %s339
      %s341 = smul.addr %s340, 8
      %s342 = scalar_lea.vmem %s0, %s341
      %p343 = pneg %p53
      %p344 = pneg %p50
      %s345 = smul.u32 %s23, 4
      %s346 = ssub.s32 %s345, 1
      %p347 = scmp.gt.s32.totalorder %s346, 0
      %s348 = scalar_select %p347, %s346, 0
      %s349 = smul.u32 2, %s348
      %p350 = scmp.lt.s32.totalorder %s22, 1
      %s351 = scalar_select %p350, %s22, 1
      %p352 = scmp.lt.s32.totalorder %s349, 15
      %s353 = scalar_select %p352, %s349, 15
      %s354 = smul.addr %s353, 2
      %s355 = smul.addr %s351, 32
      %s356 = sadd.s32 %s354, %s355
      %s357 = smul.addr %s356, 8
      %s358 = scalar_lea.vmem %s1, %s357
      %p359 = pneg %p89
      %p360 = pneg %p86
      %s361 = sadd.s32 %s23, 1
      %s362 = smul.u32 %s361, 4
      %p363 = scmp.lt.s32.totalorder %s362, 7
      %s364 = scalar_select %p363, %s362, 7
      %s365 = smul.u32 2, %s364
      %p366 = scmp.lt.s32.totalorder %s22, 1
      %s367 = scalar_select %p366, %s22, 1
      %p368 = scmp.lt.s32.totalorder %s365, 15
      %s369 = scalar_select %p368, %s365, 15
      %s370 = smul.addr %s369, 2
      %s371 = smul.addr %s367, 32
      %s372 = sadd.s32 %s370, %s371
      %s373 = smul.addr %s372, 8
      %s374 = scalar_lea.vmem %s2, %s373
      %p375 = pneg %p125
      %p376 = pneg %p122
      %p377 = pneg %p146
      %p378 = pneg %p143
      %p379 = pneg %p167
      %p380 = pneg %p164
      %p381 = pneg %p188
      %p382 = pneg %p185
      %p383 = pneg %p209
      %p384 = pneg %p206
      %p385 = pneg %p237
      %p386 = pneg %p234
      %s387 = smul.u32 8, %s23
      %p388 = scmp.lt.s32.totalorder %s22, 1
      %s389 = scalar_select %p388, %s22, 1
      %p390 = scmp.lt.s32.totalorder %s387, 15
      %s391 = scalar_select %p390, %s387, 15
      %s392 = smul.addr %s391, 2
      %s393 = smul.addr %s389, 32
      %s394 = sadd.s32 %s392, %s393
      %s395 = smul.addr %s394, 8
      %s396 = scalar_lea.vmem %s7, %s395
      %s397 = smul.u32 8, %s23
      %p398 = scmp.lt.s32.totalorder %s22, 1
      %s399 = scalar_select %p398, %s22, 1
      %p400 = scmp.lt.s32.totalorder %s397, 15
      %s401 = scalar_select %p400, %s397, 15
      %s402 = smul.addr %s401, 2
      %s403 = smul.addr %s399, 32
      %s404 = sadd.s32 %s402, %s403
      %s405 = smul.addr %s404, 8
      %s406 = scalar_lea.vmem %s0, %s405
      %s407 = smul.u32 8, %s23
      %s408 = smul.u32 %s23, 4
      %s409 = ssub.s32 %s408, 1
      %p410 = scmp.gt.s32.totalorder %s409, 0
      %s411 = scalar_select %p410, %s409, 0
      %s412 = smul.u32 2, %s411
      %p413 = scmp.lt.s32.totalorder %s22, 1
      %s414 = scalar_select %p413, %s22, 1
      %p415 = scmp.lt.s32.totalorder %s412, 15
      %s416 = scalar_select %p415, %s412, 15
      %s417 = smul.addr %s416, 2
      %s418 = smul.addr %s414, 32
      %s419 = sadd.s32 %s417, %s418
      %s420 = smul.addr %s419, 8
      %s421 = scalar_lea.vmem %s1, %s420
      %s422 = smul.u32 %s23, 4
      %s423 = ssub.s32 %s422, 1
      %p424 = scmp.gt.s32.totalorder %s423, 0
      %s425 = scalar_select %p424, %s423, 0
      %s426 = smul.u32 2, %s425
      %s427 = sadd.s32 %s23, 1
      %s428 = smul.u32 %s427, 4
      %p429 = scmp.lt.s32.totalorder %s428, 7
      %s430 = scalar_select %p429, %s428, 7
      %s431 = smul.u32 2, %s430
      %p432 = scmp.lt.s32.totalorder %s22, 1
      %s433 = scalar_select %p432, %s22, 1
      %p434 = scmp.lt.s32.totalorder %s431, 15
      %s435 = scalar_select %p434, %s431, 15
      %s436 = smul.addr %s435, 2
      %s437 = smul.addr %s433, 32
      %s438 = sadd.s32 %s436, %s437
      %s439 = smul.addr %s438, 8
      %s440 = scalar_lea.vmem %s2, %s439
      %s441 = sadd.s32 %s23, 1
      %s442 = smul.u32 %s441, 4
      %p443 = scmp.lt.s32.totalorder %s442, 7
      %s444 = scalar_select %p443, %s442, 7
      %s445 = smul.u32 2, %s444
      %s446 = smul.u32 8, %s23
      %p447 = scmp.lt.s32.totalorder %s22, 1
      %s448 = scalar_select %p447, %s22, 1
      %p449 = scmp.lt.s32.totalorder %s446, 15
      %s450 = scalar_select %p449, %s446, 15
      %s451 = smul.addr %s450, 2
      %s452 = smul.addr %s448, 32
      %s453 = sadd.s32 %s451, %s452
      %s454 = smul.addr %s453, 8
      %s455 = scalar_lea.vmem %s7, %s454
      %s456 = smul.u32 8, %s23
      %v458 = vld [vmem:[%s406] sm:$0xff]
      %v459 = vld [vmem:[%s406 + $0x8] sm:$0xff]
      %v460 = vld [vmem:[%s406 + $0x10] sm:$0xff]
      %v461 = vld [vmem:[%s406 + $0x18] sm:$0xff]
      %v462 = vld [vmem:[%s406 + $0x20] sm:$0xff]
      %v463 = vld [vmem:[%s406 + $0x28] sm:$0xff]
      %v464 = vld [vmem:[%s406 + $0x30] sm:$0xff]
      %v465 = vld [vmem:[%s406 + $0x38] sm:$0xff]
      %v466 = vld [vmem:[%s406 + $0x40] sm:$0xff]
      %v467 = vld [vmem:[%s406 + $0x48] sm:$0xff]
      %v468 = vld [vmem:[%s406 + $0x50] sm:$0xff]
      %v469 = vld [vmem:[%s406 + $0x58] sm:$0xff]
      %v470 = vld [vmem:[%s406 + $0x60] sm:$0xff]
      %v471 = vld [vmem:[%s406 + $0x68] sm:$0xff]
      %v472 = vld [vmem:[%s406 + $0x70] sm:$0xff]
      %v473 = vld [vmem:[%s406 + $0x78] sm:$0xff]
      %v474 = vpack.c.bf16 %v458, %v458
      %v475 = vpack.c.bf16 %v459, %v459
      %v476 = vpack.c.bf16 %v460, %v460
      %v477 = vpack.c.bf16 %v461, %v461
      %v478 = vpack.c.bf16 %v462, %v462
      %v479 = vpack.c.bf16 %v463, %v463
      %v480 = vpack.c.bf16 %v464, %v464
      %v481 = vpack.c.bf16 %v465, %v465
      %v482 = vpack.c.bf16 %v466, %v466
      %v483 = vpack.c.bf16 %v467, %v467
      %v484 = vpack.c.bf16 %v468, %v468
      %v485 = vpack.c.bf16 %v469, %v469
      %v486 = vpack.c.bf16 %v470, %v470
      %v487 = vpack.c.bf16 %v471, %v471
      %v488 = vpack.c.bf16 %v472, %v472
      %v489 = vpack.c.bf16 %v473, %v473
      %s490 = scalar_lea.vmem [#allocation2], 16
      %vm491 = vcmask 27648
      %492 = vst.msk [vmem:[%s490] sm:$0xf] %vm491, %v474
      %493 = vst.msk [vmem:[%s490 + $0x4] sm:$0xf] %vm491, %v475
      %494 = vst.msk [vmem:[%s490 + $0x8] sm:$0xf] %vm491, %v476
      %495 = vst.msk [vmem:[%s490 + $0xc] sm:$0xf] %vm491, %v477
      %496 = vst.msk [vmem:[%s490 + $0x10] sm:$0xf] %vm491, %v478
      %497 = vst.msk [vmem:[%s490 + $0x14] sm:$0xf] %vm491, %v479
      %498 = vst.msk [vmem:[%s490 + $0x18] sm:$0xf] %vm491, %v480
      %499 = vst.msk [vmem:[%s490 + $0x1c] sm:$0xf] %vm491, %v481
      %500 = vst.msk [vmem:[%s490 + $0x20] sm:$0xf] %vm491, %v482
      %501 = vst.msk [vmem:[%s490 + $0x24] sm:$0xf] %vm491, %v483
      %502 = vst.msk [vmem:[%s490 + $0x28] sm:$0xf] %vm491, %v484
      %503 = vst.msk [vmem:[%s490 + $0x2c] sm:$0xf] %vm491, %v485
      %504 = vst.msk [vmem:[%s490 + $0x30] sm:$0xf] %vm491, %v486
      %505 = vst.msk [vmem:[%s490 + $0x34] sm:$0xf] %vm491, %v487
      %506 = vst.msk [vmem:[%s490 + $0x38] sm:$0xf] %vm491, %v488
      %507 = vst.msk [vmem:[%s490 + $0x3c] sm:$0xf] %vm491, %v489
      %v508 = vld [vmem:[%s421] sm:$0xff]
      %v509 = vld [vmem:[%s421 + $0x8] sm:$0xff]
      %v510 = vld [vmem:[%s421 + $0x10] sm:$0xff]
      %v511 = vld [vmem:[%s421 + $0x18] sm:$0xff]
      %v512 = vpack.c.bf16 %v508, %v508
      %v513 = vpack.c.bf16 %v509, %v509
      %v514 = vpack.c.bf16 %v510, %v510
      %v515 = vpack.c.bf16 %v511, %v511
      %516 = vst.msk [vmem:[#allocation2] sm:$0xf] %vm491, %v512
      %517 = vst.msk [vmem:[#allocation2 + $0x4] sm:$0xf] %vm491, %v513
      %518 = vst.msk [vmem:[#allocation2 + $0x8] sm:$0xf] %vm491, %v514
      %519 = vst.msk [vmem:[#allocation2 + $0xc] sm:$0xf] %vm491, %v515
      %v520 = vld [vmem:[%s440] sm:$0xff]
      %v521 = vld [vmem:[%s440 + $0x8] sm:$0xff]
      %v522 = vld [vmem:[%s440 + $0x10] sm:$0xff]
      %v523 = vld [vmem:[%s440 + $0x18] sm:$0xff]
      %v524 = vpack.c.bf16 %v520, %v520
      %v525 = vpack.c.bf16 %v521, %v521
      %v526 = vpack.c.bf16 %v522, %v522
      %v527 = vpack.c.bf16 %v523, %v523
      %s528 = scalar_lea.vmem [#allocation2], 80
      %529 = vst.msk [vmem:[%s528] sm:$0xf] %vm491, %v524
      %530 = vst.msk [vmem:[%s528 + $0x4] sm:$0xf] %vm491, %v525
      %531 = vst.msk [vmem:[%s528 + $0x8] sm:$0xf] %vm491, %v526
      %532 = vst.msk [vmem:[%s528 + $0xc] sm:$0xf] %vm491, %v527
      %p533 = scmp.eq.s32.totalorder %s23, 0
      // Predicated region
      $region49: #{tpu_custom_call.1} parent=47 // pred_check
        %p534 = pneg %p533
      $region50: #{tpu_custom_call.1} parent=47 // pred_check_branch
        %536 = sbr.rel (%p534) target = $region52
      $region51: #{tpu_custom_call.1} parent=47 // pred_region
        %537 = vst.msk [vmem:[#allocation2] sm:$0xf] %vm491, 0
        %538 = vst.msk [vmem:[#allocation2 + $0x4] sm:$0xf] %vm491, 0
        %539 = vst.msk [vmem:[#allocation2 + $0x8] sm:$0xf] %vm491, 0
        %540 = vst.msk [vmem:[#allocation2 + $0xc] sm:$0xf] %vm491, 0
      $region52: #{tpu_custom_call.1} parent=47 // pred_fallthru
        _
      %p541 = scmp.eq.s32.totalorder %s23, 1
      // Predicated region
      $region53: #{tpu_custom_call.1} parent=47 // pred_check
        %p542 = pneg %p541
      $region54: #{tpu_custom_call.1} parent=47 // pred_check_branch
        %544 = sbr.rel (%p542) target = $region56
      $region55: #{tpu_custom_call.1} parent=47 // pred_region
        %545 = vst.msk [vmem:[%s528] sm:$0xf] %vm491, 0
        %546 = vst.msk [vmem:[%s528 + $0x4] sm:$0xf] %vm491, 0
        %547 = vst.msk [vmem:[%s528 + $0x8] sm:$0xf] %vm491, 0
        %548 = vst.msk [vmem:[%s528 + $0xc] sm:$0xf] %vm491, 0
      $region56: #{tpu_custom_call.1} parent=47 // pred_fallthru
        _
      %v549 = vld [vmem:[#allocation2] sm:$0xf]
      %v550 = vld [vmem:[#allocation2 + $0x4] sm:$0xf]
      %v551 = vld [vmem:[#allocation2 + $0x8] sm:$0xf]
      %v552 = vld [vmem:[#allocation2 + $0xc] sm:$0xf]
      %v553 = vld [vmem:[#allocation2 + $0x10] sm:$0xf]
      %v554 = vld [vmem:[#allocation2 + $0x14] sm:$0xf]
      %v555 = vld [vmem:[#allocation2 + $0x18] sm:$0xf]
      %v556 = vld [vmem:[#allocation2 + $0x1c] sm:$0xf]
      %v557 = vld [vmem:[#allocation2 + $0x20] sm:$0xf]
      %v558 = vld [vmem:[#allocation2 + $0x24] sm:$0xf]
      %v559 = vld [vmem:[#allocation2 + $0x28] sm:$0xf]
      %v560 = vld [vmem:[#allocation2 + $0x2c] sm:$0xf]
      %v561 = vld [vmem:[#allocation2 + $0x30] sm:$0xf]
      %v562 = vld [vmem:[#allocation2 + $0x34] sm:$0xf]
      %v563 = vld [vmem:[#allocation2 + $0x38] sm:$0xf]
      %v564 = vld [vmem:[#allocation2 + $0x3c] sm:$0xf]
      %v565 = vld [vmem:[#allocation2 + $0x40] sm:$0xf]
      %v566 = vld [vmem:[#allocation2 + $0x44] sm:$0xf]
      %v567 = vld [vmem:[#allocation2 + $0x48] sm:$0xf]
      %v568 = vld [vmem:[#allocation2 + $0x4c] sm:$0xf]
      %v569 = vld [vmem:[#allocation2 + $0x50] sm:$0xf]
      %v570 = vld [vmem:[#allocation2 + $0x54] sm:$0xf]
      %v571 = vld [vmem:[#allocation2 + $0x58] sm:$0xf]
      %v572 = vld [vmem:[#allocation2 + $0x5c] sm:$0xf]
      %v597 = vunpack.c.l.b16 %v549
      %v598 = vunpack.c.l.b16 %v550
      %v599 = vunpack.c.l.b16 %v551
      %v600 = vunpack.c.l.b16 %v552
      %v601 = vunpack.c.l.b16 %v553
      %v602 = vunpack.c.l.b16 %v554
      %v603 = vunpack.c.l.b16 %v555
      %v604 = vunpack.c.l.b16 %v556
      %v605 = vunpack.c.l.b16 %v557
      %v606 = vunpack.c.l.b16 %v558
      %v607 = vunpack.c.l.b16 %v559
      %v608 = vunpack.c.l.b16 %v560
      %v609 = vunpack.c.l.b16 %v561
      %v610 = vunpack.c.l.b16 %v562
      %v611 = vunpack.c.l.b16 %v563
      %v612 = vunpack.c.l.b16 %v564
      %v613 = vunpack.c.l.b16 %v565
      %v614 = vunpack.c.l.b16 %v566
      %v615 = vunpack.c.l.b16 %v567
      %v616 = vunpack.c.l.b16 %v568
      %v617 = vunpack.c.l.b16 %v569
      %v618 = vunpack.c.l.b16 %v570
      %v619 = vunpack.c.l.b16 %v571
      %v620 = vunpack.c.l.b16 %v572
      %v621 = vpack.c.b16 %v598, %v597
      %v622 = vpack.c.b16 %v600, %v599
      %v623 = vpack.c.b16 %v602, %v601
      %v624 = vpack.c.b16 %v604, %v603
      %v625 = vpack.c.b16 %v606, %v605
      %v626 = vpack.c.b16 %v608, %v607
      %v627 = vpack.c.b16 %v610, %v609
      %v628 = vpack.c.b16 %v612, %v611
      %v629 = vpack.c.b16 %v614, %v613
      %v630 = vpack.c.b16 %v616, %v615
      %v631 = vpack.c.b16 %v618, %v617
      %v632 = vpack.c.b16 %v620, %v619
      %v634 = vshrl.u32 %v621, 16
      %v636 = vrot.slane %v634, 7
      %v637 = vshll.u32 %v621, 16
      %v639 = vor.u32 %v636, %v637
      %v641 = vshrl.u32 %v622, 16
      %v643 = vrot.slane %v641, 7
      %v644 = vshll.u32 %v622, 16
      %v646 = vor.u32 %v643, %v644
      %v648 = vshrl.u32 %v623, 16
      %v650 = vrot.slane %v648, 7
      %v651 = vshll.u32 %v623, 16
      %v653 = vor.u32 %v650, %v651
      %v655 = vshrl.u32 %v624, 16
      %v657 = vrot.slane %v655, 7
      %v658 = vshll.u32 %v624, 16
      %v660 = vor.u32 %v657, %v658
      %v662 = vshrl.u32 %v625, 16
      %v664 = vrot.slane %v662, 7
      %v665 = vshll.u32 %v625, 16
      %v667 = vor.u32 %v664, %v665
      %v669 = vshrl.u32 %v626, 16
      %v671 = vrot.slane %v669, 7
      %v672 = vshll.u32 %v626, 16
      %v674 = vor.u32 %v671, %v672
      %v676 = vshrl.u32 %v627, 16
      %v678 = vrot.slane %v676, 7
      %v679 = vshll.u32 %v627, 16
      %v681 = vor.u32 %v678, %v679
      %v683 = vshrl.u32 %v628, 16
      %v685 = vrot.slane %v683, 7
      %v686 = vshll.u32 %v628, 16
      %v688 = vor.u32 %v685, %v686
      %v690 = vshrl.u32 %v629, 16
      %v692 = vrot.slane %v690, 7
      %v693 = vshll.u32 %v629, 16
      %v695 = vor.u32 %v692, %v693
      %v697 = vshrl.u32 %v630, 16
      %v699 = vrot.slane %v697, 7
      %v700 = vshll.u32 %v630, 16
      %v702 = vor.u32 %v699, %v700
      %v704 = vshrl.u32 %v631, 16
      %v706 = vrot.slane %v704, 7
      %v707 = vshll.u32 %v631, 16
      %v709 = vor.u32 %v706, %v707
      %v711 = vshrl.u32 %v632, 16
      %v713 = vrot.slane %v711, 7
      %v714 = vshll.u32 %v632, 16
      %v716 = vor.u32 %v713, %v714
      %vm729 = vcmask 1040384
      %vm730 = vsmask.f32 256
      %vm731 = vmand %vm729, %vm730
      %v732 = vsel %vm731, 0, %v639
      %v733 = vsel %vm731, 0, %v646
      %v734 = vsel %vm731, 0, %v653
      %v735 = vsel %vm731, 0, %v660
      %v736 = vsel %vm731, 0, %v667
      %v737 = vsel %vm731, 0, %v674
      %v738 = vsel %vm731, 0, %v681
      %v739 = vsel %vm731, 0, %v688
      %v740 = vsel %vm731, 0, %v695
      %v741 = vsel %vm731, 0, %v702
      %v742 = vsel %vm731, 0, %v709
      %v743 = vsel %vm731, 0, %v716
      %v744 = vrot.slane %v637, 1
      %v745 = vor.u32 %v634, %v744
      %v746 = vrot.slane %v644, 1
      %v747 = vor.u32 %v641, %v746
      %v748 = vrot.slane %v651, 1
      %v749 = vor.u32 %v648, %v748
      %v750 = vrot.slane %v658, 1
      %v751 = vor.u32 %v655, %v750
      %v752 = vrot.slane %v665, 1
      %v753 = vor.u32 %v662, %v752
      %v754 = vrot.slane %v672, 1
      %v755 = vor.u32 %v669, %v754
      %v756 = vrot.slane %v679, 1
      %v757 = vor.u32 %v676, %v756
      %v758 = vrot.slane %v686, 1
      %v759 = vor.u32 %v683, %v758
      %v760 = vrot.slane %v693, 1
      %v761 = vor.u32 %v690, %v760
      %v762 = vrot.slane %v700, 1
      %v763 = vor.u32 %v697, %v762
      %v764 = vrot.slane %v707, 1
      %v765 = vor.u32 %v704, %v764
      %v766 = vrot.slane %v714, 1
      %v767 = vor.u32 %v711, %v766
      %vm780 = vcmask 1047552
      %vm781 = vsmask.f32 7424
      %vm782 = vmand %vm780, %vm781
      %v783 = vsel %vm782, %v745, 0
      %v784 = vsel %vm782, %v747, 0
      %v785 = vsel %vm782, %v749, 0
      %v786 = vsel %vm782, %v751, 0
      %v787 = vsel %vm782, %v753, 0
      %v788 = vsel %vm782, %v755, 0
      %v789 = vsel %vm782, %v757, 0
      %v790 = vsel %vm782, %v759, 0
      %v791 = vsel %vm782, %v761, 0
      %v792 = vsel %vm782, %v763, 0
      %v793 = vsel %vm782, %v765, 0
      %v794 = vsel %vm782, %v767, 0
      %795 = vrot.lane.b32.xlu0 %v621, 4
      %v796 = vpop.permute.xlu0 %795
      %797 = vrot.lane.b32.xlu0 %v622, 4
      %v798 = vpop.permute.xlu0 %797
      %799 = vrot.lane.b32.xlu0 %v623, 4
      %v800 = vpop.permute.xlu0 %799
      %801 = vrot.lane.b32.xlu0 %v624, 4
      %v802 = vpop.permute.xlu0 %801
      %803 = vrot.lane.b32.xlu0 %v625, 4
      %v804 = vpop.permute.xlu0 %803
      %805 = vrot.lane.b32.xlu0 %v626, 4
      %v806 = vpop.permute.xlu0 %805
      %807 = vrot.lane.b32.xlu0 %v627, 4
      %v808 = vpop.permute.xlu0 %807
      %809 = vrot.lane.b32.xlu0 %v628, 4
      %v810 = vpop.permute.xlu0 %809
      %811 = vrot.lane.b32.xlu0 %v629, 4
      %v812 = vpop.permute.xlu0 %811
      %813 = vrot.lane.b32.xlu0 %v630, 4
      %v814 = vpop.permute.xlu0 %813
      %815 = vrot.lane.b32.xlu0 %v631, 4
      %v816 = vpop.permute.xlu0 %815
      %817 = vrot.lane.b32.xlu0 %v632, 4
      %v818 = vpop.permute.xlu0 %817
      %831 = vrot.lane.b32.xlu0 %v783, 8
      %v832 = vpop.permute.xlu0 %831
      %833 = vrot.lane.b32.xlu0 %v784, 8
      %v834 = vpop.permute.xlu0 %833
      %835 = vrot.lane.b32.xlu0 %v785, 8
      %v836 = vpop.permute.xlu0 %835
      %837 = vrot.lane.b32.xlu0 %v786, 8
      %v838 = vpop.permute.xlu0 %837
      %839 = vrot.lane.b32.xlu0 %v787, 8
      %v840 = vpop.permute.xlu0 %839
      %841 = vrot.lane.b32.xlu0 %v788, 8
      %v842 = vpop.permute.xlu0 %841
      %843 = vrot.lane.b32.xlu0 %v789, 8
      %v844 = vpop.permute.xlu0 %843
      %845 = vrot.lane.b32.xlu0 %v790, 8
      %v846 = vpop.permute.xlu0 %845
      %847 = vrot.lane.b32.xlu0 %v791, 8
      %v848 = vpop.permute.xlu0 %847
      %849 = vrot.lane.b32.xlu0 %v792, 8
      %v850 = vpop.permute.xlu0 %849
      %851 = vrot.lane.b32.xlu0 %v793, 8
      %v852 = vpop.permute.xlu0 %851
      %853 = vrot.lane.b32.xlu0 %v794, 8
      %v854 = vpop.permute.xlu0 %853
      %vm855 = vcmask 31744
      %v858 = vsel %vm855, %v732, %v796
      %v861 = vsel %vm855, %v733, %v798
      %v864 = vsel %vm855, %v734, %v800
      %v867 = vsel %vm855, %v735, %v802
      %v870 = vsel %vm855, %v736, %v804
      %v873 = vsel %vm855, %v737, %v806
      %v876 = vsel %vm855, %v738, %v808
      %v879 = vsel %vm855, %v739, %v810
      %v882 = vsel %vm855, %v740, %v812
      %v885 = vsel %vm855, %v741, %v814
      %v888 = vsel %vm855, %v742, %v816
      %v891 = vsel %vm855, %v743, %v818
      %vm892 = vcmask 64512
      %v894 = vsel %vm892, %v858, %v832
      %v896 = vsel %vm892, %v861, %v834
      %v898 = vsel %vm892, %v864, %v836
      %v900 = vsel %vm892, %v867, %v838
      %v902 = vsel %vm892, %v870, %v840
      %v904 = vsel %vm892, %v873, %v842
      %v906 = vsel %vm892, %v876, %v844
      %v908 = vsel %vm892, %v879, %v846
      %v910 = vsel %vm892, %v882, %v848
      %v912 = vsel %vm892, %v885, %v850
      %v914 = vsel %vm892, %v888, %v852
      %v916 = vsel %vm892, %v891, %v854
      %v917 = vld [vmem:[%s3] sm:$0xf]
      %v918 = vld [vmem:[%s3 + $0x4] sm:$0x3]
      %s919 = scalar_lea.vmem %s3, 8
      %v920 = vld [vmem:[%s919] sm:$0xf]
      %v921 = vld [vmem:[%s919 + $0x4] sm:$0x3]
      %v924 = vunpack.c.l.b16 %v920
      %v925 = vunpack.c.l.b16 %v921
      %v926 = vpack.c.b16 %v925, %v924
      %vm927 = vcmask 97280
      %v928 = vsel %vm927, %v896, 0
      %v930 = vsel %vm927, %v898, 0
      %v932 = vsel %vm927, %v900, 0
      %v934 = vsel %vm927, %v902, 0
      %v936 = vsel %vm927, %v904, 0
      %v938 = vsel %vm927, %v906, 0
      %v940 = vsel %vm927, %v908, 0
      %v942 = vsel %vm927, %v910, 0
      %v944 = vsel %vm927, %v912, 0
      %v946 = vsel %vm927, %v914, 0
      %vm948 = vcmask 1045504
      %v950 = vsel %vm948, %v926, 0
      %952 = vmatpush.bf16.msra.mxu0 0
      %953 = vmatpush.bf16.msra.mxu0 0
      %954 = vmatpush.bf16.msra.mxu0 0
      %955 = vmatpush.bf16.msra.mxu0 0
      %956 = vmatpush.bf16.msra.mxu0 0
      %957 = vmatpush.bf16.msra.mxu0 0
      %958 = vmatpush.bf16.msra.mxu0 0
      %959 = vmatpush.bf16.msra.mxu0 %v950
      %960 = vmatmul.bf16.gmra.mxu0 %v928
      %v961 = vpop.f32.mrf.mxu0
      %v962 = vadd.f32 0.0, %v961
      %v963 = vpop.f32.mrf.mxu0
      %v964 = vadd.f32 0.0, %v963
      %965 = vmatmul.bf16.gmra.mxu0 %v930
      %v966 = vpop.f32.mrf.mxu0
      %v967 = vadd.f32 0.0, %v966
      %v968 = vpop.f32.mrf.mxu0
      %v969 = vadd.f32 0.0, %v968
      %970 = vmatmul.bf16.gmra.mxu0 %v932
      %v971 = vpop.f32.mrf.mxu0
      %v972 = vadd.f32 0.0, %v971
      %v973 = vpop.f32.mrf.mxu0
      %v974 = vadd.f32 0.0, %v973
      %975 = vmatmul.bf16.gmra.mxu0 %v934
      %v976 = vpop.f32.mrf.mxu0
      %v977 = vadd.f32 0.0, %v976
      %v978 = vpop.f32.mrf.mxu0
      %v979 = vadd.f32 0.0, %v978
      %980 = vmatmul.bf16.gmra.mxu0 %v936
      %v981 = vpop.f32.mrf.mxu0
      %v982 = vadd.f32 0.0, %v981
      %v983 = vpop.f32.mrf.mxu0
      %v984 = vadd.f32 0.0, %v983
      %985 = vmatmul.bf16.gmra.mxu0 %v938
      %v986 = vpop.f32.mrf.mxu0
      %v987 = vadd.f32 0.0, %v986
      %v988 = vpop.f32.mrf.mxu0
      %v989 = vadd.f32 0.0, %v988
      %990 = vmatmul.bf16.gmra.mxu0 %v940
      %v991 = vpop.f32.mrf.mxu0
      %v992 = vadd.f32 0.0, %v991
      %v993 = vpop.f32.mrf.mxu0
      %v994 = vadd.f32 0.0, %v993
      %995 = vmatmul.bf16.gmra.mxu0 %v942
      %v996 = vpop.f32.mrf.mxu0
      %v997 = vadd.f32 0.0, %v996
      %v998 = vpop.f32.mrf.mxu0
      %v999 = vadd.f32 0.0, %v998
      %1000 = vmatmul.bf16.gmra.mxu0 %v944
      %v1001 = vpop.f32.mrf.mxu0
      %v1002 = vadd.f32 0.0, %v1001
      %v1003 = vpop.f32.mrf.mxu0
      %v1004 = vadd.f32 0.0, %v1003
      %1005 = vmatmul.bf16.gmra.mxu0 %v946
      %v1006 = vpop.f32.mrf.mxu0
      %v1007 = vadd.f32 0.0, %v1006
      %v1008 = vpop.f32.mrf.mxu0
      %v1009 = vadd.f32 0.0, %v1008
      %1010 = vdwg.mxu0
      %v1013 = vunpack.c.l.b16 %v917
      %v1014 = vunpack.c.l.b16 %v918
      %v1015 = vpack.c.b16 %v1014, %v1013
      %v1016 = vsel %vm927, %v894, 0
      %v1019 = vsel %vm948, %v1015, 0
      %1021 = vmatpush.bf16.msra.mxu0 0
      %1022 = vmatpush.bf16.msra.mxu0 0
      %1023 = vmatpush.bf16.msra.mxu0 0
      %1024 = vmatpush.bf16.msra.mxu0 0
      %1025 = vmatpush.bf16.msra.mxu0 0
      %1026 = vmatpush.bf16.msra.mxu0 0
      %1027 = vmatpush.bf16.msra.mxu0 0
      %1028 = vmatpush.bf16.msra.mxu0 %v1019
      %1029 = vmatmul.bf16.gmra.mxu0 %v1016
      %v1030 = vpop.f32.mrf.mxu0
      %v1031 = vadd.f32 %v962, %v1030
      %v1032 = vpop.f32.mrf.mxu0
      %v1033 = vadd.f32 %v964, %v1032
      %1034 = vmatmul.bf16.gmra.mxu0 %v928
      %v1035 = vpop.f32.mrf.mxu0
      %v1036 = vadd.f32 %v967, %v1035
      %v1037 = vpop.f32.mrf.mxu0
      %v1038 = vadd.f32 %v969, %v1037
      %1039 = vmatmul.bf16.gmra.mxu0 %v930
      %v1040 = vpop.f32.mrf.mxu0
      %v1041 = vadd.f32 %v972, %v1040
      %v1042 = vpop.f32.mrf.mxu0
      %v1043 = vadd.f32 %v974, %v1042
      %1044 = vmatmul.bf16.gmra.mxu0 %v932
      %v1045 = vpop.f32.mrf.mxu0
      %v1046 = vadd.f32 %v977, %v1045
      %v1047 = vpop.f32.mrf.mxu0
      %v1048 = vadd.f32 %v979, %v1047
      %1049 = vmatmul.bf16.gmra.mxu0 %v934
      %v1050 = vpop.f32.mrf.mxu0
      %v1051 = vadd.f32 %v982, %v1050
      %v1052 = vpop.f32.mrf.mxu0
      %v1053 = vadd.f32 %v984, %v1052
      %1054 = vmatmul.bf16.gmra.mxu0 %v936
      %v1055 = vpop.f32.mrf.mxu0
      %v1056 = vadd.f32 %v987, %v1055
      %v1057 = vpop.f32.mrf.mxu0
      %v1058 = vadd.f32 %v989, %v1057
      %1059 = vmatmul.bf16.gmra.mxu0 %v938
      %v1060 = vpop.f32.mrf.mxu0
      %v1061 = vadd.f32 %v992, %v1060
      %v1062 = vpop.f32.mrf.mxu0
      %v1063 = vadd.f32 %v994, %v1062
      %1064 = vmatmul.bf16.gmra.mxu0 %v940
      %v1065 = vpop.f32.mrf.mxu0
      %v1066 = vadd.f32 %v997, %v1065
      %v1067 = vpop.f32.mrf.mxu0
      %v1068 = vadd.f32 %v999, %v1067
      %1069 = vmatmul.bf16.gmra.mxu0 %v942
      %v1070 = vpop.f32.mrf.mxu0
      %v1071 = vadd.f32 %v1002, %v1070
      %v1072 = vpop.f32.mrf.mxu0
      %v1073 = vadd.f32 %v1004, %v1072
      %1074 = vmatmul.bf16.gmra.mxu0 %v944
      %v1075 = vpop.f32.mrf.mxu0
      %v1076 = vadd.f32 %v1007, %v1075
      %v1077 = vpop.f32.mrf.mxu0
      %v1078 = vadd.f32 %v1009, %v1077
      %1079 = vdwg.mxu0
      %s1080 = scalar_lea.vmem %s3, 16
      %v1081 = vld [vmem:[%s1080] sm:$0xf]
      %v1082 = vld [vmem:[%s1080 + $0x4] sm:$0x3]
      %v1085 = vunpack.c.l.b16 %v1081
      %v1086 = vunpack.c.l.b16 %v1082
      %v1087 = vpack.c.b16 %v1086, %v1085
      %v1088 = vsel %vm927, %v916, 0
      %v1091 = vsel %vm948, %v1087, 0
      %1093 = vmatpush.bf16.msra.mxu0 0
      %1094 = vmatpush.bf16.msra.mxu0 0
      %1095 = vmatpush.bf16.msra.mxu0 0
      %1096 = vmatpush.bf16.msra.mxu0 0
      %1097 = vmatpush.bf16.msra.mxu0 0
      %1098 = vmatpush.bf16.msra.mxu0 0
      %1099 = vmatpush.bf16.msra.mxu0 0
      %1100 = vmatpush.bf16.msra.mxu0 %v1091
      %1101 = vmatmul.bf16.gmra.mxu0 %v930
      %v1102 = vpop.f32.mrf.mxu0
      %v1103 = vadd.f32 0.0, %v1102
      %v1104 = vpop.f32.mrf.mxu0
      %v1105 = vadd.f32 0.0, %v1104
      %1106 = vmatmul.bf16.gmra.mxu0 %v932
      %v1107 = vpop.f32.mrf.mxu0
      %v1108 = vadd.f32 0.0, %v1107
      %v1109 = vpop.f32.mrf.mxu0
      %v1110 = vadd.f32 0.0, %v1109
      %1111 = vmatmul.bf16.gmra.mxu0 %v934
      %v1112 = vpop.f32.mrf.mxu0
      %v1113 = vadd.f32 0.0, %v1112
      %v1114 = vpop.f32.mrf.mxu0
      %v1115 = vadd.f32 0.0, %v1114
      %1116 = vmatmul.bf16.gmra.mxu0 %v936
      %v1117 = vpop.f32.mrf.mxu0
      %v1118 = vadd.f32 0.0, %v1117
      %v1119 = vpop.f32.mrf.mxu0
      %v1120 = vadd.f32 0.0, %v1119
      %1121 = vmatmul.bf16.gmra.mxu0 %v938
      %v1122 = vpop.f32.mrf.mxu0
      %v1123 = vadd.f32 0.0, %v1122
      %v1124 = vpop.f32.mrf.mxu0
      %v1125 = vadd.f32 0.0, %v1124
      %1126 = vmatmul.bf16.gmra.mxu0 %v940
      %v1127 = vpop.f32.mrf.mxu0
      %v1128 = vadd.f32 0.0, %v1127
      %v1129 = vpop.f32.mrf.mxu0
      %v1130 = vadd.f32 0.0, %v1129
      %1131 = vmatmul.bf16.gmra.mxu0 %v942
      %v1132 = vpop.f32.mrf.mxu0
      %v1133 = vadd.f32 0.0, %v1132
      %v1134 = vpop.f32.mrf.mxu0
      %v1135 = vadd.f32 0.0, %v1134
      %1136 = vmatmul.bf16.gmra.mxu0 %v944
      %v1137 = vpop.f32.mrf.mxu0
      %v1138 = vadd.f32 0.0, %v1137
      %v1139 = vpop.f32.mrf.mxu0
      %v1140 = vadd.f32 0.0, %v1139
      %1141 = vmatmul.bf16.gmra.mxu0 %v946
      %v1142 = vpop.f32.mrf.mxu0
      %v1143 = vadd.f32 0.0, %v1142
      %v1144 = vpop.f32.mrf.mxu0
      %v1145 = vadd.f32 0.0, %v1144
      %1146 = vmatmul.bf16.gmra.mxu0 %v1088
      %v1147 = vpop.f32.mrf.mxu0
      %v1148 = vadd.f32 0.0, %v1147
      %v1149 = vpop.f32.mrf.mxu0
      %v1150 = vadd.f32 0.0, %v1149
      %1151 = vdwg.mxu0
      %v1152 = vadd.f32 %v1031, %v1103
      %v1153 = vadd.f32 %v1033, %v1105
      %v1154 = vadd.f32 %v1036, %v1108
      %v1155 = vadd.f32 %v1038, %v1110
      %v1156 = vadd.f32 %v1041, %v1113
      %v1157 = vadd.f32 %v1043, %v1115
      %v1158 = vadd.f32 %v1046, %v1118
      %v1159 = vadd.f32 %v1048, %v1120
      %v1160 = vadd.f32 %v1051, %v1123
      %v1161 = vadd.f32 %v1053, %v1125
      %v1162 = vadd.f32 %v1056, %v1128
      %v1163 = vadd.f32 %v1058, %v1130
      %v1164 = vadd.f32 %v1061, %v1133
      %v1165 = vadd.f32 %v1063, %v1135
      %v1166 = vadd.f32 %v1066, %v1138
      %v1167 = vadd.f32 %v1068, %v1140
      %v1168 = vadd.f32 %v1071, %v1143
      %v1169 = vadd.f32 %v1073, %v1145
      %v1170 = vadd.f32 %v1076, %v1148
      %v1171 = vadd.f32 %v1078, %v1150
      %v1172 = vld [vmem:[%s4] sm:$0x1]
      %v1174 = vperm.slane %v1172, 0
      %v1176 = vadd.f32 %v1152, %v1174
      %v1177 = vadd.f32 %v1153, %v1174
      %v1178 = vadd.f32 %v1154, %v1174
      %v1179 = vadd.f32 %v1155, %v1174
      %v1180 = vadd.f32 %v1156, %v1174
      %v1181 = vadd.f32 %v1157, %v1174
      %v1182 = vadd.f32 %v1158, %v1174
      %v1183 = vadd.f32 %v1159, %v1174
      %v1184 = vadd.f32 %v1160, %v1174
      %v1185 = vadd.f32 %v1161, %v1174
      %v1186 = vadd.f32 %v1162, %v1174
      %v1187 = vadd.f32 %v1163, %v1174
      %v1188 = vadd.f32 %v1164, %v1174
      %v1189 = vadd.f32 %v1165, %v1174
      %v1190 = vadd.f32 %v1166, %v1174
      %v1191 = vadd.f32 %v1167, %v1174
      %v1192 = vadd.f32 %v1168, %v1174
      %v1193 = vadd.f32 %v1169, %v1174
      %v1194 = vadd.f32 %v1170, %v1174
      %v1195 = vadd.f32 %v1171, %v1174
      %v1196 = vmax.f32 %v1176, 0.0
      %v1197 = vmax.f32 %v1177, 0.0
      %v1198 = vmax.f32 %v1178, 0.0
      %v1199 = vmax.f32 %v1179, 0.0
      %v1200 = vmax.f32 %v1180, 0.0
      %v1201 = vmax.f32 %v1181, 0.0
      %v1202 = vmax.f32 %v1182, 0.0
      %v1203 = vmax.f32 %v1183, 0.0
      %v1204 = vmax.f32 %v1184, 0.0
      %v1205 = vmax.f32 %v1185, 0.0
      %v1206 = vmax.f32 %v1186, 0.0
      %v1207 = vmax.f32 %v1187, 0.0
      %v1208 = vmax.f32 %v1188, 0.0
      %v1209 = vmax.f32 %v1189, 0.0
      %v1210 = vmax.f32 %v1190, 0.0
      %v1211 = vmax.f32 %v1191, 0.0
      %v1212 = vmax.f32 %v1192, 0.0
      %v1213 = vmax.f32 %v1193, 0.0
      %v1214 = vmax.f32 %v1194, 0.0
      %v1215 = vmax.f32 %v1195, 0.0
      %v1216 = vpack.c.bf16 %v1196, %v1196
      %v1217 = vpack.c.bf16 %v1197, %v1197
      %v1218 = vpack.c.bf16 %v1198, %v1198
      %v1219 = vpack.c.bf16 %v1199, %v1199
      %v1220 = vpack.c.bf16 %v1200, %v1200
      %v1221 = vpack.c.bf16 %v1201, %v1201
      %v1222 = vpack.c.bf16 %v1202, %v1202
      %v1223 = vpack.c.bf16 %v1203, %v1203
      %v1224 = vpack.c.bf16 %v1204, %v1204
      %v1225 = vpack.c.bf16 %v1205, %v1205
      %v1226 = vpack.c.bf16 %v1206, %v1206
      %v1227 = vpack.c.bf16 %v1207, %v1207
      %v1228 = vpack.c.bf16 %v1208, %v1208
      %v1229 = vpack.c.bf16 %v1209, %v1209
      %v1230 = vpack.c.bf16 %v1210, %v1210
      %v1231 = vpack.c.bf16 %v1211, %v1211
      %v1232 = vpack.c.bf16 %v1212, %v1212
      %v1233 = vpack.c.bf16 %v1213, %v1213
      %v1234 = vpack.c.bf16 %v1214, %v1214
      %v1235 = vpack.c.bf16 %v1215, %v1215
      %1236 = vst.msk [vmem:[#allocation3] sm:$0xf] %vm491, %v1216
      %1237 = vst.msk [vmem:[#allocation3 + $0x4] sm:$0xf] %vm491, %v1217
      %1238 = vst.msk [vmem:[#allocation3 + $0x8] sm:$0xf] %vm491, %v1218
      %1239 = vst.msk [vmem:[#allocation3 + $0xc] sm:$0xf] %vm491, %v1219
      %1240 = vst.msk [vmem:[#allocation3 + $0x10] sm:$0xf] %vm491, %v1220
      %1241 = vst.msk [vmem:[#allocation3 + $0x14] sm:$0xf] %vm491, %v1221
      %1242 = vst.msk [vmem:[#allocation3 + $0x18] sm:$0xf] %vm491, %v1222
      %1243 = vst.msk [vmem:[#allocation3 + $0x1c] sm:$0xf] %vm491, %v1223
      %1244 = vst.msk [vmem:[#allocation3 + $0x20] sm:$0xf] %vm491, %v1224
      %1245 = vst.msk [vmem:[#allocation3 + $0x24] sm:$0xf] %vm491, %v1225
      %1246 = vst.msk [vmem:[#allocation3 + $0x28] sm:$0xf] %vm491, %v1226
      %1247 = vst.msk [vmem:[#allocation3 + $0x2c] sm:$0xf] %vm491, %v1227
      %1248 = vst.msk [vmem:[#allocation3 + $0x30] sm:$0xf] %vm491, %v1228
      %1249 = vst.msk [vmem:[#allocation3 + $0x34] sm:$0xf] %vm491, %v1229
      %1250 = vst.msk [vmem:[#allocation3 + $0x38] sm:$0xf] %vm491, %v1230
      %1251 = vst.msk [vmem:[#allocation3 + $0x3c] sm:$0xf] %vm491, %v1231
      %1252 = vst.msk [vmem:[#allocation3 + $0x40] sm:$0xf] %vm491, %v1232
      %1253 = vst.msk [vmem:[#allocation3 + $0x44] sm:$0xf] %vm491, %v1233
      %1254 = vst.msk [vmem:[#allocation3 + $0x48] sm:$0xf] %vm491, %v1234
      %1255 = vst.msk [vmem:[#allocation3 + $0x4c] sm:$0xf] %vm491, %v1235
      // Predicated region
      $region57: #{tpu_custom_call.1} parent=47 // pred_check
        %p1256 = pneg %p533
      $region58: #{tpu_custom_call.1} parent=47 // pred_check_branch
        %1258 = sbr.rel (%p1256) target = $region60
      $region59: #{tpu_custom_call.1} parent=47 // pred_region
        %1259 = vst.msk [vmem:[#allocation3] sm:$0xf] %vm491, 0
        %1260 = vst.msk [vmem:[#allocation3 + $0x4] sm:$0xf] %vm491, 0
      $region60: #{tpu_custom_call.1} parent=47 // pred_fallthru
        _
      // Predicated region
      $region61: #{tpu_custom_call.1} parent=47 // pred_check
        %p1261 = pneg %p541
      $region62: #{tpu_custom_call.1} parent=47 // pred_check_branch
        %1263 = sbr.rel (%p1261) target = $region64
      $region63: #{tpu_custom_call.1} parent=47 // pred_region
        %s1264 = scalar_lea.vmem [#allocation3], 72
        %1265 = vst.msk [vmem:[%s1264] sm:$0xf] %vm491, 0
        %1266 = vst.msk [vmem:[%s1264 + $0x4] sm:$0xf] %vm491, 0
      $region64: #{tpu_custom_call.1} parent=47 // pred_fallthru
        _
      %v1267 = vld [vmem:[#allocation3] sm:$0xf]
      %v1268 = vld [vmem:[#allocation3 + $0x4] sm:$0xf]
      %v1269 = vld [vmem:[#allocation3 + $0x8] sm:$0xf]
      %v1270 = vld [vmem:[#allocation3 + $0xc] sm:$0xf]
      %v1271 = vld [vmem:[#allocation3 + $0x10] sm:$0xf]
      %v1272 = vld [vmem:[#allocation3 + $0x14] sm:$0xf]
      %v1273 = vld [vmem:[#allocation3 + $0x18] sm:$0xf]
      %v1274 = vld [vmem:[#allocation3 + $0x1c] sm:$0xf]
      %v1275 = vld [vmem:[#allocation3 + $0x20] sm:$0xf]
      %v1276 = vld [vmem:[#allocation3 + $0x24] sm:$0xf]
      %v1277 = vld [vmem:[#allocation3 + $0x28] sm:$0xf]
      %v1278 = vld [vmem:[#allocation3 + $0x2c] sm:$0xf]
      %v1279 = vld [vmem:[#allocation3 + $0x30] sm:$0xf]
      %v1280 = vld [vmem:[#allocation3 + $0x34] sm:$0xf]
      %v1281 = vld [vmem:[#allocation3 + $0x38] sm:$0xf]
      %v1282 = vld [vmem:[#allocation3 + $0x3c] sm:$0xf]
      %v1283 = vld [vmem:[#allocation3 + $0x40] sm:$0xf]
      %v1284 = vld [vmem:[#allocation3 + $0x44] sm:$0xf]
      %v1285 = vld [vmem:[#allocation3 + $0x48] sm:$0xf]
      %v1286 = vld [vmem:[#allocation3 + $0x4c] sm:$0xf]
      %v1307 = vunpack.c.l.b16 %v1267
      %v1308 = vunpack.c.l.b16 %v1268
      %v1309 = vunpack.c.l.b16 %v1269
      %v1310 = vunpack.c.l.b16 %v1270
      %v1311 = vunpack.c.l.b16 %v1271
      %v1312 = vunpack.c.l.b16 %v1272
      %v1313 = vunpack.c.l.b16 %v1273
      %v1314 = vunpack.c.l.b16 %v1274
      %v1315 = vunpack.c.l.b16 %v1275
      %v1316 = vunpack.c.l.b16 %v1276
      %v1317 = vunpack.c.l.b16 %v1277
      %v1318 = vunpack.c.l.b16 %v1278
      %v1319 = vunpack.c.l.b16 %v1279
      %v1320 = vunpack.c.l.b16 %v1280
      %v1321 = vunpack.c.l.b16 %v1281
      %v1322 = vunpack.c.l.b16 %v1282
      %v1323 = vunpack.c.l.b16 %v1283
      %v1324 = vunpack.c.l.b16 %v1284
      %v1325 = vunpack.c.l.b16 %v1285
      %v1326 = vunpack.c.l.b16 %v1286
      %v1327 = vpack.c.b16 %v1308, %v1307
      %v1328 = vpack.c.b16 %v1310, %v1309
      %v1329 = vpack.c.b16 %v1312, %v1311
      %v1330 = vpack.c.b16 %v1314, %v1313
      %v1331 = vpack.c.b16 %v1316, %v1315
      %v1332 = vpack.c.b16 %v1318, %v1317
      %v1333 = vpack.c.b16 %v1320, %v1319
      %v1334 = vpack.c.b16 %v1322, %v1321
      %v1335 = vpack.c.b16 %v1324, %v1323
      %v1336 = vpack.c.b16 %v1326, %v1325
      %v1338 = vshrl.u32 %v1327, 16
      %v1340 = vrot.slane %v1338, 7
      %v1341 = vshll.u32 %v1327, 16
      %v1343 = vor.u32 %v1340, %v1341
      %v1345 = vshrl.u32 %v1328, 16
      %v1347 = vrot.slane %v1345, 7
      %v1348 = vshll.u32 %v1328, 16
      %v1350 = vor.u32 %v1347, %v1348
      %v1352 = vshrl.u32 %v1329, 16
      %v1354 = vrot.slane %v1352, 7
      %v1355 = vshll.u32 %v1329, 16
      %v1357 = vor.u32 %v1354, %v1355
      %v1359 = vshrl.u32 %v1330, 16
      %v1361 = vrot.slane %v1359, 7
      %v1362 = vshll.u32 %v1330, 16
      %v1364 = vor.u32 %v1361, %v1362
      %v1366 = vshrl.u32 %v1331, 16
      %v1368 = vrot.slane %v1366, 7
      %v1369 = vshll.u32 %v1331, 16
      %v1371 = vor.u32 %v1368, %v1369
      %v1373 = vshrl.u32 %v1332, 16
      %v1375 = vrot.slane %v1373, 7
      %v1376 = vshll.u32 %v1332, 16
      %v1378 = vor.u32 %v1375, %v1376
      %v1380 = vshrl.u32 %v1333, 16
      %v1382 = vrot.slane %v1380, 7
      %v1383 = vshll.u32 %v1333, 16
      %v1385 = vor.u32 %v1382, %v1383
      %v1387 = vshrl.u32 %v1334, 16
      %v1389 = vrot.slane %v1387, 7
      %v1390 = vshll.u32 %v1334, 16
      %v1392 = vor.u32 %v1389, %v1390
      %v1394 = vshrl.u32 %v1335, 16
      %v1396 = vrot.slane %v1394, 7
      %v1397 = vshll.u32 %v1335, 16
      %v1399 = vor.u32 %v1396, %v1397
      %v1401 = vshrl.u32 %v1336, 16
      %v1403 = vrot.slane %v1401, 7
      %v1404 = vshll.u32 %v1336, 16
      %v1406 = vor.u32 %v1403, %v1404
      %v1417 = vsel %vm731, 0, %v1343
      %v1418 = vsel %vm731, 0, %v1350
      %v1419 = vsel %vm731, 0, %v1357
      %v1420 = vsel %vm731, 0, %v1364
      %v1421 = vsel %vm731, 0, %v1371
      %v1422 = vsel %vm731, 0, %v1378
      %v1423 = vsel %vm731, 0, %v1385
      %v1424 = vsel %vm731, 0, %v1392
      %v1425 = vsel %vm731, 0, %v1399
      %v1426 = vsel %vm731, 0, %v1406
      %v1427 = vrot.slane %v1341, 1
      %v1428 = vor.u32 %v1338, %v1427
      %v1429 = vrot.slane %v1348, 1
      %v1430 = vor.u32 %v1345, %v1429
      %v1431 = vrot.slane %v1355, 1
      %v1432 = vor.u32 %v1352, %v1431
      %v1433 = vrot.slane %v1362, 1
      %v1434 = vor.u32 %v1359, %v1433
      %v1435 = vrot.slane %v1369, 1
      %v1436 = vor.u32 %v1366, %v1435
      %v1437 = vrot.slane %v1376, 1
      %v1438 = vor.u32 %v1373, %v1437
      %v1439 = vrot.slane %v1383, 1
      %v1440 = vor.u32 %v1380, %v1439
      %v1441 = vrot.slane %v1390, 1
      %v1442 = vor.u32 %v1387, %v1441
      %v1443 = vrot.slane %v1397, 1
      %v1444 = vor.u32 %v1394, %v1443
      %v1445 = vrot.slane %v1404, 1
      %v1446 = vor.u32 %v1401, %v1445
      %v1457 = vsel %vm782, %v1428, 0
      %v1458 = vsel %vm782, %v1430, 0
      %v1459 = vsel %vm782, %v1432, 0
      %v1460 = vsel %vm782, %v1434, 0
      %v1461 = vsel %vm782, %v1436, 0
      %v1462 = vsel %vm782, %v1438, 0
      %v1463 = vsel %vm782, %v1440, 0
      %v1464 = vsel %vm782, %v1442, 0
      %v1465 = vsel %vm782, %v1444, 0
      %v1466 = vsel %vm782, %v1446, 0
      %1467 = vrot.lane.b32.xlu0 %v1327, 4
      %v1468 = vpop.permute.xlu0 %1467
      %1469 = vrot.lane.b32.xlu0 %v1328, 4
      %v1470 = vpop.permute.xlu0 %1469
      %1471 = vrot.lane.b32.xlu0 %v1329, 4
      %v1472 = vpop.permute.xlu0 %1471
      %1473 = vrot.lane.b32.xlu0 %v1330, 4
      %v1474 = vpop.permute.xlu0 %1473
      %1475 = vrot.lane.b32.xlu0 %v1331, 4
      %v1476 = vpop.permute.xlu0 %1475
      %1477 = vrot.lane.b32.xlu0 %v1332, 4
      %v1478 = vpop.permute.xlu0 %1477
      %1479 = vrot.lane.b32.xlu0 %v1333, 4
      %v1480 = vpop.permute.xlu0 %1479
      %1481 = vrot.lane.b32.xlu0 %v1334, 4
      %v1482 = vpop.permute.xlu0 %1481
      %1483 = vrot.lane.b32.xlu0 %v1335, 4
      %v1484 = vpop.permute.xlu0 %1483
      %1485 = vrot.lane.b32.xlu0 %v1336, 4
      %v1486 = vpop.permute.xlu0 %1485
      %1497 = vrot.lane.b32.xlu0 %v1457, 8
      %v1498 = vpop.permute.xlu0 %1497
      %1499 = vrot.lane.b32.xlu0 %v1458, 8
      %v1500 = vpop.permute.xlu0 %1499
      %1501 = vrot.lane.b32.xlu0 %v1459, 8
      %v1502 = vpop.permute.xlu0 %1501
      %1503 = vrot.lane.b32.xlu0 %v1460, 8
      %v1504 = vpop.permute.xlu0 %1503
      %1505 = vrot.lane.b32.xlu0 %v1461, 8
      %v1506 = vpop.permute.xlu0 %1505
      %1507 = vrot.lane.b32.xlu0 %v1462, 8
      %v1508 = vpop.permute.xlu0 %1507
      %1509 = vrot.lane.b32.xlu0 %v1463, 8
      %v1510 = vpop.permute.xlu0 %1509
      %1511 = vrot.lane.b32.xlu0 %v1464, 8
      %v1512 = vpop.permute.xlu0 %1511
      %1513 = vrot.lane.b32.xlu0 %v1465, 8
      %v1514 = vpop.permute.xlu0 %1513
      %1515 = vrot.lane.b32.xlu0 %v1466, 8
      %v1516 = vpop.permute.xlu0 %1515
      %v1519 = vsel %vm855, %v1417, %v1468
      %v1522 = vsel %vm855, %v1418, %v1470
      %v1525 = vsel %vm855, %v1419, %v1472
      %v1528 = vsel %vm855, %v1420, %v1474
      %v1531 = vsel %vm855, %v1421, %v1476
      %v1534 = vsel %vm855, %v1422, %v1478
      %v1537 = vsel %vm855, %v1423, %v1480
      %v1540 = vsel %vm855, %v1424, %v1482
      %v1543 = vsel %vm855, %v1425, %v1484
      %v1546 = vsel %vm855, %v1426, %v1486
      %v1548 = vsel %vm892, %v1519, %v1498
      %v1550 = vsel %vm892, %v1522, %v1500
      %v1552 = vsel %vm892, %v1525, %v1502
      %v1554 = vsel %vm892, %v1528, %v1504
      %v1556 = vsel %vm892, %v1531, %v1506
      %v1558 = vsel %vm892, %v1534, %v1508
      %v1560 = vsel %vm892, %v1537, %v1510
      %v1562 = vsel %vm892, %v1540, %v1512
      %v1564 = vsel %vm892, %v1543, %v1514
      %v1566 = vsel %vm892, %v1546, %v1516
      %v1567 = vld [vmem:[%s5] sm:$0xf]
      %v1568 = vld [vmem:[%s5 + $0x4] sm:$0x3]
      %s1569 = scalar_lea.vmem %s5, 8
      %v1570 = vld [vmem:[%s1569] sm:$0xf]
      %v1571 = vld [vmem:[%s1569 + $0x4] sm:$0x3]
      %v1574 = vunpack.c.l.b16 %v1570
      %v1575 = vunpack.c.l.b16 %v1571
      %v1576 = vpack.c.b16 %v1575, %v1574
      %v1577 = vsel %vm927, %v1550, 0
      %v1579 = vsel %vm927, %v1552, 0
      %v1581 = vsel %vm927, %v1554, 0
      %v1583 = vsel %vm927, %v1556, 0
      %v1585 = vsel %vm927, %v1558, 0
      %v1587 = vsel %vm927, %v1560, 0
      %v1589 = vsel %vm927, %v1562, 0
      %v1591 = vsel %vm927, %v1564, 0
      %v1594 = vsel %vm948, %v1576, 0
      %1596 = vmatpush.bf16.msra.mxu0 0
      %1597 = vmatpush.bf16.msra.mxu0 0
      %1598 = vmatpush.bf16.msra.mxu0 0
      %1599 = vmatpush.bf16.msra.mxu0 0
      %1600 = vmatpush.bf16.msra.mxu0 0
      %1601 = vmatpush.bf16.msra.mxu0 0
      %1602 = vmatpush.bf16.msra.mxu0 0
      %1603 = vmatpush.bf16.msra.mxu0 %v1594
      %1604 = vmatmul.bf16.gmra.mxu0 %v1577
      %v1605 = vpop.f32.mrf.mxu0
      %v1606 = vadd.f32 0.0, %v1605
      %v1607 = vpop.f32.mrf.mxu0
      %v1608 = vadd.f32 0.0, %v1607
      %1609 = vmatmul.bf16.gmra.mxu0 %v1579
      %v1610 = vpop.f32.mrf.mxu0
      %v1611 = vadd.f32 0.0, %v1610
      %v1612 = vpop.f32.mrf.mxu0
      %v1613 = vadd.f32 0.0, %v1612
      %1614 = vmatmul.bf16.gmra.mxu0 %v1581
      %v1615 = vpop.f32.mrf.mxu0
      %v1616 = vadd.f32 0.0, %v1615
      %v1617 = vpop.f32.mrf.mxu0
      %v1618 = vadd.f32 0.0, %v1617
      %1619 = vmatmul.bf16.gmra.mxu0 %v1583
      %v1620 = vpop.f32.mrf.mxu0
      %v1621 = vadd.f32 0.0, %v1620
      %v1622 = vpop.f32.mrf.mxu0
      %v1623 = vadd.f32 0.0, %v1622
      %1624 = vmatmul.bf16.gmra.mxu0 %v1585
      %v1625 = vpop.f32.mrf.mxu0
      %v1626 = vadd.f32 0.0, %v1625
      %v1627 = vpop.f32.mrf.mxu0
      %v1628 = vadd.f32 0.0, %v1627
      %1629 = vmatmul.bf16.gmra.mxu0 %v1587
      %v1630 = vpop.f32.mrf.mxu0
      %v1631 = vadd.f32 0.0, %v1630
      %v1632 = vpop.f32.mrf.mxu0
      %v1633 = vadd.f32 0.0, %v1632
      %1634 = vmatmul.bf16.gmra.mxu0 %v1589
      %v1635 = vpop.f32.mrf.mxu0
      %v1636 = vadd.f32 0.0, %v1635
      %v1637 = vpop.f32.mrf.mxu0
      %v1638 = vadd.f32 0.0, %v1637
      %1639 = vmatmul.bf16.gmra.mxu0 %v1591
      %v1640 = vpop.f32.mrf.mxu0
      %v1641 = vadd.f32 0.0, %v1640
      %v1642 = vpop.f32.mrf.mxu0
      %v1643 = vadd.f32 0.0, %v1642
      %1644 = vdwg.mxu0
      %v1647 = vunpack.c.l.b16 %v1567
      %v1648 = vunpack.c.l.b16 %v1568
      %v1649 = vpack.c.b16 %v1648, %v1647
      %v1650 = vsel %vm927, %v1548, 0
      %v1653 = vsel %vm948, %v1649, 0
      %1655 = vmatpush.bf16.msra.mxu0 0
      %1656 = vmatpush.bf16.msra.mxu0 0
      %1657 = vmatpush.bf16.msra.mxu0 0
      %1658 = vmatpush.bf16.msra.mxu0 0
      %1659 = vmatpush.bf16.msra.mxu0 0
      %1660 = vmatpush.bf16.msra.mxu0 0
      %1661 = vmatpush.bf16.msra.mxu0 0
      %1662 = vmatpush.bf16.msra.mxu0 %v1653
      %1663 = vmatmul.bf16.gmra.mxu0 %v1650
      %v1664 = vpop.f32.mrf.mxu0
      %v1665 = vadd.f32 %v1606, %v1664
      %v1666 = vpop.f32.mrf.mxu0
      %v1667 = vadd.f32 %v1608, %v1666
      %1668 = vmatmul.bf16.gmra.mxu0 %v1577
      %v1669 = vpop.f32.mrf.mxu0
      %v1670 = vadd.f32 %v1611, %v1669
      %v1671 = vpop.f32.mrf.mxu0
      %v1672 = vadd.f32 %v1613, %v1671
      %1673 = vmatmul.bf16.gmra.mxu0 %v1579
      %v1674 = vpop.f32.mrf.mxu0
      %v1675 = vadd.f32 %v1616, %v1674
      %v1676 = vpop.f32.mrf.mxu0
      %v1677 = vadd.f32 %v1618, %v1676
      %1678 = vmatmul.bf16.gmra.mxu0 %v1581
      %v1679 = vpop.f32.mrf.mxu0
      %v1680 = vadd.f32 %v1621, %v1679
      %v1681 = vpop.f32.mrf.mxu0
      %v1682 = vadd.f32 %v1623, %v1681
      %1683 = vmatmul.bf16.gmra.mxu0 %v1583
      %v1684 = vpop.f32.mrf.mxu0
      %v1685 = vadd.f32 %v1626, %v1684
      %v1686 = vpop.f32.mrf.mxu0
      %v1687 = vadd.f32 %v1628, %v1686
      %1688 = vmatmul.bf16.gmra.mxu0 %v1585
      %v1689 = vpop.f32.mrf.mxu0
      %v1690 = vadd.f32 %v1631, %v1689
      %v1691 = vpop.f32.mrf.mxu0
      %v1692 = vadd.f32 %v1633, %v1691
      %1693 = vmatmul.bf16.gmra.mxu0 %v1587
      %v1694 = vpop.f32.mrf.mxu0
      %v1695 = vadd.f32 %v1636, %v1694
      %v1696 = vpop.f32.mrf.mxu0
      %v1697 = vadd.f32 %v1638, %v1696
      %1698 = vmatmul.bf16.gmra.mxu0 %v1589
      %v1699 = vpop.f32.mrf.mxu0
      %v1700 = vadd.f32 %v1641, %v1699
      %v1701 = vpop.f32.mrf.mxu0
      %v1702 = vadd.f32 %v1643, %v1701
      %1703 = vdwg.mxu0
      %s1704 = scalar_lea.vmem %s5, 16
      %v1705 = vld [vmem:[%s1704] sm:$0xf]
      %v1706 = vld [vmem:[%s1704 + $0x4] sm:$0x3]
      %v1709 = vunpack.c.l.b16 %v1705
      %v1710 = vunpack.c.l.b16 %v1706
      %v1711 = vpack.c.b16 %v1710, %v1709
      %v1712 = vsel %vm927, %v1566, 0
      %v1715 = vsel %vm948, %v1711, 0
      %1717 = vmatpush.bf16.msra.mxu0 0
      %1718 = vmatpush.bf16.msra.mxu0 0
      %1719 = vmatpush.bf16.msra.mxu0 0
      %1720 = vmatpush.bf16.msra.mxu0 0
      %1721 = vmatpush.bf16.msra.mxu0 0
      %1722 = vmatpush.bf16.msra.mxu0 0
      %1723 = vmatpush.bf16.msra.mxu0 0
      %1724 = vmatpush.bf16.msra.mxu0 %v1715
      %1725 = vmatmul.bf16.gmra.mxu0 %v1579
      %v1726 = vpop.f32.mrf.mxu0
      %v1727 = vadd.f32 0.0, %v1726
      %v1728 = vpop.f32.mrf.mxu0
      %v1729 = vadd.f32 0.0, %v1728
      %1730 = vmatmul.bf16.gmra.mxu0 %v1581
      %v1731 = vpop.f32.mrf.mxu0
      %v1732 = vadd.f32 0.0, %v1731
      %v1733 = vpop.f32.mrf.mxu0
      %v1734 = vadd.f32 0.0, %v1733
      %1735 = vmatmul.bf16.gmra.mxu0 %v1583
      %v1736 = vpop.f32.mrf.mxu0
      %v1737 = vadd.f32 0.0, %v1736
      %v1738 = vpop.f32.mrf.mxu0
      %v1739 = vadd.f32 0.0, %v1738
      %1740 = vmatmul.bf16.gmra.mxu0 %v1585
      %v1741 = vpop.f32.mrf.mxu0
      %v1742 = vadd.f32 0.0, %v1741
      %v1743 = vpop.f32.mrf.mxu0
      %v1744 = vadd.f32 0.0, %v1743
      %1745 = vmatmul.bf16.gmra.mxu0 %v1587
      %v1746 = vpop.f32.mrf.mxu0
      %v1747 = vadd.f32 0.0, %v1746
      %v1748 = vpop.f32.mrf.mxu0
      %v1749 = vadd.f32 0.0, %v1748
      %1750 = vmatmul.bf16.gmra.mxu0 %v1589
      %v1751 = vpop.f32.mrf.mxu0
      %v1752 = vadd.f32 0.0, %v1751
      %v1753 = vpop.f32.mrf.mxu0
      %v1754 = vadd.f32 0.0, %v1753
      %1755 = vmatmul.bf16.gmra.mxu0 %v1591
      %v1756 = vpop.f32.mrf.mxu0
      %v1757 = vadd.f32 0.0, %v1756
      %v1758 = vpop.f32.mrf.mxu0
      %v1759 = vadd.f32 0.0, %v1758
      %1760 = vmatmul.bf16.gmra.mxu0 %v1712
      %v1761 = vpop.f32.mrf.mxu0
      %v1762 = vadd.f32 0.0, %v1761
      %v1763 = vpop.f32.mrf.mxu0
      %v1764 = vadd.f32 0.0, %v1763
      %1765 = vdwg.mxu0
      %v1766 = vadd.f32 %v1665, %v1727
      %v1767 = vadd.f32 %v1667, %v1729
      %v1768 = vadd.f32 %v1670, %v1732
      %v1769 = vadd.f32 %v1672, %v1734
      %v1770 = vadd.f32 %v1675, %v1737
      %v1771 = vadd.f32 %v1677, %v1739
      %v1772 = vadd.f32 %v1680, %v1742
      %v1773 = vadd.f32 %v1682, %v1744
      %v1774 = vadd.f32 %v1685, %v1747
      %v1775 = vadd.f32 %v1687, %v1749
      %v1776 = vadd.f32 %v1690, %v1752
      %v1777 = vadd.f32 %v1692, %v1754
      %v1778 = vadd.f32 %v1695, %v1757
      %v1779 = vadd.f32 %v1697, %v1759
      %v1780 = vadd.f32 %v1700, %v1762
      %v1781 = vadd.f32 %v1702, %v1764
      %v1782 = vld [vmem:[%s6] sm:$0x1]
      %v1784 = vperm.slane %v1782, 0
      %v1786 = vadd.f32 %v1766, %v1784
      %v1787 = vadd.f32 %v1767, %v1784
      %v1788 = vadd.f32 %v1768, %v1784
      %v1789 = vadd.f32 %v1769, %v1784
      %v1790 = vadd.f32 %v1770, %v1784
      %v1791 = vadd.f32 %v1771, %v1784
      %v1792 = vadd.f32 %v1772, %v1784
      %v1793 = vadd.f32 %v1773, %v1784
      %v1794 = vadd.f32 %v1774, %v1784
      %v1795 = vadd.f32 %v1775, %v1784
      %v1796 = vadd.f32 %v1776, %v1784
      %v1797 = vadd.f32 %v1777, %v1784
      %v1798 = vadd.f32 %v1778, %v1784
      %v1799 = vadd.f32 %v1779, %v1784
      %v1800 = vadd.f32 %v1780, %v1784
      %v1801 = vadd.f32 %v1781, %v1784
      %v1802 = vld [vmem:[%s406] sm:$0xff]
      %v1803 = vld [vmem:[%s406 + $0x8] sm:$0xff]
      %v1804 = vld [vmem:[%s406 + $0x10] sm:$0xff]
      %v1805 = vld [vmem:[%s406 + $0x18] sm:$0xff]
      %v1806 = vld [vmem:[%s406 + $0x20] sm:$0xff]
      %v1807 = vld [vmem:[%s406 + $0x28] sm:$0xff]
      %v1808 = vld [vmem:[%s406 + $0x30] sm:$0xff]
      %v1809 = vld [vmem:[%s406 + $0x38] sm:$0xff]
      %v1810 = vld [vmem:[%s406 + $0x40] sm:$0xff]
      %v1811 = vld [vmem:[%s406 + $0x48] sm:$0xff]
      %v1812 = vld [vmem:[%s406 + $0x50] sm:$0xff]
      %v1813 = vld [vmem:[%s406 + $0x58] sm:$0xff]
      %v1814 = vld [vmem:[%s406 + $0x60] sm:$0xff]
      %v1815 = vld [vmem:[%s406 + $0x68] sm:$0xff]
      %v1816 = vld [vmem:[%s406 + $0x70] sm:$0xff]
      %v1817 = vld [vmem:[%s406 + $0x78] sm:$0xff]
      %v1818 = vadd.f32 %v1786, %v1802
      %v1819 = vadd.f32 %v1787, %v1803
      %v1820 = vadd.f32 %v1788, %v1804
      %v1821 = vadd.f32 %v1789, %v1805
      %v1822 = vadd.f32 %v1790, %v1806
      %v1823 = vadd.f32 %v1791, %v1807
      %v1824 = vadd.f32 %v1792, %v1808
      %v1825 = vadd.f32 %v1793, %v1809
      %v1826 = vadd.f32 %v1794, %v1810
      %v1827 = vadd.f32 %v1795, %v1811
      %v1828 = vadd.f32 %v1796, %v1812
      %v1829 = vadd.f32 %v1797, %v1813
      %v1830 = vadd.f32 %v1798, %v1814
      %v1831 = vadd.f32 %v1799, %v1815
      %v1832 = vadd.f32 %v1800, %v1816
      %v1833 = vadd.f32 %v1801, %v1817
      %1834 = vst.msk [vmem:[%s455] sm:$0xff] %vm855, %v1818
      %1835 = vst.msk [vmem:[%s455 + $0x8] sm:$0xff] %vm855, %v1819
      %1836 = vst.msk [vmem:[%s455 + $0x10] sm:$0xff] %vm855, %v1820
      %1837 = vst.msk [vmem:[%s455 + $0x18] sm:$0xff] %vm855, %v1821
      %1838 = vst.msk [vmem:[%s455 + $0x20] sm:$0xff] %vm855, %v1822
      %1839 = vst.msk [vmem:[%s455 + $0x28] sm:$0xff] %vm855, %v1823
      %1840 = vst.msk [vmem:[%s455 + $0x30] sm:$0xff] %vm855, %v1824
      %1841 = vst.msk [vmem:[%s455 + $0x38] sm:$0xff] %vm855, %v1825
      %1842 = vst.msk [vmem:[%s455 + $0x40] sm:$0xff] %vm855, %v1826
      %1843 = vst.msk [vmem:[%s455 + $0x48] sm:$0xff] %vm855, %v1827
      %1844 = vst.msk [vmem:[%s455 + $0x50] sm:$0xff] %vm855, %v1828
      %1845 = vst.msk [vmem:[%s455 + $0x58] sm:$0xff] %vm855, %v1829
      %1846 = vst.msk [vmem:[%s455 + $0x60] sm:$0xff] %vm855, %v1830
      %1847 = vst.msk [vmem:[%s455 + $0x68] sm:$0xff] %vm855, %v1831
      %1848 = vst.msk [vmem:[%s455 + $0x70] sm:$0xff] %vm855, %v1832
      %1849 = vst.msk [vmem:[%s455 + $0x78] sm:$0xff] %vm855, %v1833
      %s1850 = smul.u32 8, %s23
      %p1851 = scmp.lt.s32.totalorder %s22, 1
      %s1852 = scalar_select %p1851, %s22, 1
      %p1853 = scmp.lt.s32.totalorder %s1850, 15
      %s1854 = scalar_select %p1853, %s1850, 15
      %s1855 = smul.addr %s1854, 2
      %s1856 = smul.addr %s1852, 32
      %s1857 = sadd.s32 %s1855, %s1856
      %s1858 = smul.addr %s1857, 8
      %s1859 = scalar_lea.vmem %s7, %s1858
      // Predicated region
      $region65: #{tpu_custom_call.1} parent=47 // pred_check
        %p1860 = pneg %p234
      $region66: #{tpu_custom_call.1} parent=47 // pred_check_branch
        %1862 = sbr.rel (%p1860) target = $region68
      $region67: #{tpu_custom_call.1} parent=47 // pred_region
        %s1863 = smul.u32 8, %s23
      $region68: #{tpu_custom_call.1} parent=47 // pred_fallthru
        _
    $region48: #{tpu_custom_call.1} parent=5 // pred_fallthru
      _
    %p1864 = scmp.le.s32.totalorder 2, %s13
    // Predicated region
    $region69: #{tpu_custom_call.1} parent=5 // pred_check
      %p1865 = pneg %p1864
    $region70: #{tpu_custom_call.1} parent=5 // pred_check_branch
      %1867 = sbr.rel (%p1865) target = $region72
    $region71: #{tpu_custom_call.1} parent=5 // pred_region
      %s1868 = ssub.s32 %s13, 2
      // Predicated region
      $region73: #{tpu_custom_call.1} parent=71 // pred_check
        %p1869 = pneg %p240
      $region74: #{tpu_custom_call.1} parent=71 // pred_check_branch
        %1871 = sbr.rel (%p1869) target = $region76
      $region75: #{tpu_custom_call.1} parent=71 // pred_region
        %s1872 = smul.u32 8, %s25
        %p1873 = scmp.lt.s32.totalorder %s24, 1
        %s1874 = scalar_select %p1873, %s24, 1
        %p1875 = scmp.lt.s32.totalorder %s1872, 15
        %s1876 = scalar_select %p1875, %s1872, 15
        %s1877 = smul.addr %s1876, 2
        %s1878 = smul.addr %s1874, 32
        %s1879 = sadd.s32 %s1877, %s1878
        %s1880 = smul.addr %s1879, 8
        %s1881 = scalar_lea.vmem %s7, %s1880
      $region76: #{tpu_custom_call.1} parent=71 // pred_fallthru
        _
    $region72: #{tpu_custom_call.1} parent=5 // pred_fallthru
      _
  $region6: #{tpu_custom_call.1} parent=0 // loop_footer
    %s17 = sadd.s32 1, %s13
  $region7: #{tpu_custom_call.1} parent=0 // loop_footer_branch
    %12 = sbr.rel target = $region3
  $region8: #{tpu_custom_call.1} parent=0 // loop_exit
    _

</llo_original>
